<compile_context>
chip_gen: v5e
topology: v5e:2x2
jax: 0.10.0
libtpu: 0.0.40
codegen_flags: <defaults>
</compile_context>

<pallas_src>
import functools

import numpy as np
import jax
import jax.numpy as jnp
from jax.experimental import pallas as pl
from jax.experimental.pallas import tpu as pltpu

NUM_TOKENS = 6   # nn.Embedding(6, 6)
EMB_DIM = 6
CONV_CH = 6      # real conv channels
CH_PAD = 8       # conv channels padded to a sublane multiple
TOK_PAD = 8      # token (one-hot) rows padded to a sublane multiple
KSIZE = 3
HIDDEN = 256


def _vmem_spec():
    return pl.BlockSpec(memory_space=pltpu.MemorySpace.VMEM)


# ---------------------------------------------------------------------------
# The single fused Pallas kernel
# ---------------------------------------------------------------------------
def _fused_forward_kernel(idx_ref, mask_ref,
                          w1_ref, b1_ref, w2_ref, b2_ref,
                          fc1_ref, fb1_ref, fc2_ref, fb2_ref,
                          fc3_ref, fb3_ref, head_ref, hb_ref,
                          out_ref, *, height, width):
    f32 = jnp.float32
    H, W = height, width
    HW = H * W
    L = idx_ref.shape[1]                          # B * H * W (lane axis)
    B = L // HW
    T_pad = w1_ref.shape[1] // (KSIZE * KSIZE)    # 8 padded tokens

    masks = mask_ref[...]                         # (9, L) precomputed validity
    shifts = [(ky - 1) * W + (kx - 1)
              for ky in range(KSIZE) for kx in range(KSIZE)]

    def im2col(f):
        # f: (C, L) channel-major feature map for the whole batch.
        # Tap k wants out[:, p] = f[:, p + s_k] at valid positions, 0 elsewhere.
        # pltpu.roll keeps the shift on the XLU slot; at valid positions the
        # rotate never wraps across an image (or the array) boundary, and all
        # invalid positions are zeroed by the mask.
        cols = []
        for k, s in enumerate(shifts):
            if s == 0:
                cols.append(f)                    # centre tap: always valid
            else:
                cols.append(pltpu.roll(f, shift=(-s) % L, axis=1)
                            * masks[k:k + 1, :])
        return jnp.concatenate(cols, axis=0)      # (9*C, L), tap-major rows

    # One-hot token map; the embedding itself is folded into conv1's weights.
    tok = jax.lax.broadcasted_iota(jnp.int32, (T_pad, L), 0)
    onehot = (idx_ref[...] == tok).astype(f32)    # (T_pad, L)

    # conv1 (+ folded embedding) + ReLU, then conv2 + ReLU — all on the MXU
    # with f32 accumulation; feature maps stay (8, L) lane-dense in VMEM.
    f = jnp.dot(w1_ref[...], im2col(onehot),
                preferred_element_type=f32) + b1_ref[...]
    f = jnp.maximum(f, 0.0)
    f = jnp.dot(w2_ref[...], im2col(f),
                preferred_element_type=f32) + b2_ref[...]
    f = jnp.maximum(f, 0.0)                       # (CH_PAD, L)

    # PyTorch NCHW flatten: x[b, c*HW + q] = f[c, b*HW + q]  (real channels
    # only; fc1_wt keeps the original NCHW row order, so no extra permutation).
    rows = []
    for b in range(B):
        rows.append(jnp.concatenate(
            [f[c:c + 1, b * HW:(b + 1) * HW] for c in range(CONV_CH)], axis=1))
    x = jnp.concatenate(rows, axis=0)             # (B, C*HW)

    def dense(h, w_ref, b_ref, relu):
        y = jnp.dot(h.astype(w_ref.dtype), w_ref[...],
                    preferred_element_type=f32) + b_ref[...]
        return jnp.maximum(y, 0.0) if relu else y

    h = dense(x, fc1_ref, fb1_ref, True)
    h = dense(h, fc2_ref, fb2_ref, True)
    h = dense(h, fc3_ref, fb3_ref, True)
    # Fused action/value head, zero-padded to a lane-dense 128-wide output:
    # one unmasked (B, 128) store instead of two sub-128-lane masked stores.
    out_ref[...] = dense(h, head_ref, hb_ref, False)


# ---------------------------------------------------------------------------
# Trace-time (constant-folded) 3x3 "same"-padding validity masks.
# ---------------------------------------------------------------------------
def _tap_masks(h, w, b):
    """(9, b*h*w) f32 masks, one row per tap, built from per-image coords."""
    q = np.arange(h * w)
    yy, xx = q // w, q % w
    rows = []
    for ky in range(KSIZE):
        for kx in range(KSIZE):
            dy, dx = ky - 1, kx - 1
            rows.append((yy + dy >= 0) & (yy + dy < h) &
                        (xx + dx >= 0) & (xx + dx < w))
    m = np.stack(rows).astype(np.float32)         # (9, h*w)
    return jnp.asarray(np.tile(m, (1, b)))        # (9, b*h*w)


# ---------------------------------------------------------------------------
# Forward wrapper: one grid-less pallas_call, whole arrays VMEM-resident.
# ---------------------------------------------------------------------------
def cnn_policy_forward(params, obs, n_actions):
    b = obs.shape[0]
    h, w = obs.shape[-2], obs.shape[-1]
    # .long() + squeeze(1) + flatten, batch-major along the lane axis.
    idx = obs.astype(jnp.int32).reshape(1, b * h * w)
    masks = _tap_masks(h, w, b)                   # compile-time constant

    args = (idx, masks,
            params["conv1_wm"], params["conv1_b"],
            params["conv2_wm"], params["conv2_b"],
            params["fc1_wt"], params["fc1_b"],
            params["fc2_wt"], params["fc2_b"],
            params["fc3_wt"], params["fc3_b"],
            params["head_wt"], params["head_b"])
    out = pl.pallas_call(
        functools.partial(_fused_forward_kernel, height=h, width=w),
        out_shape=jax.ShapeDtypeStruct((b, params["head_wt"].shape[1]),
                                       jnp.float32),
        in_specs=[_vmem_spec()] * len(args),
        out_specs=_vmem_spec(),
    )(*args)
    # Split the fused lane-dense head output with cheap XLA slices.
    return out[:, :n_actions], out[:, n_actions:n_actions + 1]


# ---------------------------------------------------------------------------
# Deterministic parameter init (PyTorch shapes & init bounds), converted ONCE
# to kernel layout: embedding fold, conv->matrix, channel padding, transposes,
# head concat+pad, bf16 casts all live here — never in the hot path.
# ---------------------------------------------------------------------------
def init_params(key, obs_shape, n_actions):
    _, h, w = obs_shape                           # observation (1, H, W)
    conv_out = CONV_CH * h * w                    # fc1 input size (NCHW)
    ks = jax.random.split(key, 15)

    def uni(k, shape, fan_in):
        bound = 1.0 / (fan_in ** 0.5)
        return jax.random.uniform(k, shape, jnp.float32, -bound, bound)

    conv_fan = CONV_CH * KSIZE * KSIZE
    # PyTorch-shaped tensors
    emb = jax.random.normal(ks[0], (NUM_TOKENS, EMB_DIM), jnp.float32)
    conv1_w = uni(ks[1], (CONV_CH, CONV_CH, KSIZE, KSIZE), conv_fan)
    conv1_b = uni(ks[2], (CONV_CH,), conv_fan)
    conv2_w = uni(ks[3], (CONV_CH, CONV_CH, KSIZE, KSIZE), conv_fan)
    conv2_b = uni(ks[4], (CONV_CH,), conv_fan)
    fc1_w = uni(ks[5], (HIDDEN, conv_out), conv_out)
    fc1_b = uni(ks[6], (HIDDEN,), conv_out)
    fc2_w = uni(ks[7], (HIDDEN, HIDDEN), HIDDEN)
    fc2_b = uni(ks[8], (HIDDEN,), HIDDEN)
    fc3_w = uni(ks[9], (HIDDEN, HIDDEN), HIDDEN)
    fc3_b = uni(ks[10], (HIDDEN,), HIDDEN)
    act_w = uni(ks[11], (n_actions, HIDDEN), HIDDEN)
    act_b = uni(ks[12], (n_actions,), HIDDEN)
    val_w = uni(ks[13], (1, HIDDEN), HIDDEN)
    val_b = uni(ks[14], (1,), HIDDEN)

    # --- conv1 with the embedding folded in --------------------------------
    # (Cout, Cin=E, ky, kx) -> (Cout, tap, e); contract the embedding over e so
    # conv1 applies directly to the one-hot token map.  Column order is
    # tap*TOK_PAD + token, matching the kernel's patch stacking.
    w1_tap = jnp.transpose(conv1_w, (0, 2, 3, 1)).reshape(
        CONV_CH, KSIZE * KSIZE, EMB_DIM)
    emb_pad = jnp.zeros((TOK_PAD, EMB_DIM), jnp.float32).at[:NUM_TOKENS].set(emb)
    w1comb = jnp.einsum("oke,te->okt", w1_tap, emb_pad).reshape(
        CONV_CH, KSIZE * KSIZE * TOK_PAD)                       # (6, 72)
    w1comb = jnp.zeros((CH_PAD, w1comb.shape[1]),
                       jnp.float32).at[:CONV_CH].set(w1comb)    # (8, 72)

    # --- conv2 as a (Cout_pad, 9*Cin_pad) matrix, column order tap*8 + ci ---
    w2_tap = jnp.transpose(conv2_w, (0, 2, 3, 1))               # (o, ky, kx, ci)
    w2_tap = jnp.pad(w2_tap, ((0, CH_PAD - CONV_CH), (0, 0), (0, 0),
                              (0, CH_PAD - CONV_CH)))
    w2m = w2_tap.reshape(CH_PAD, KSIZE * KSIZE * CH_PAD)        # (8, 72)

    def pad_bias(bv):
        return jnp.pad(bv, (0, CH_PAD - CONV_CH)).reshape(CH_PAD, 1)

    # --- fused, zero-padded (lane-dense) action/value head ------------------
    head_w = jnp.concatenate([act_w, val_w], axis=0)            # (A+1, 256)
    head_b = jnp.concatenate([act_b, val_b], axis=0)            # (A+1,)
    head_pad = ((n_actions + 1 + 127) // 128) * 128             # -> 128
    head_wt = jnp.zeros((HIDDEN, head_pad),
                        jnp.float32).at[:, :n_actions + 1].set(head_w.T)
    head_bp = jnp.zeros((1, head_pad),
                        jnp.float32).at[0, :n_actions + 1].set(head_b)

    return {
        "conv1_wm": w1comb,                                     # (8, 72)  f32
        "conv1_b":  pad_bias(conv1_b),                          # (8, 1)   f32
        "conv2_wm": w2m,                                        # (8, 72)  f32
        "conv2_b":  pad_bias(conv2_b),                          # (8, 1)   f32
        "fc1_wt":   fc1_w.T.astype(jnp.bfloat16),               # (C*H*W, 256)
        "fc1_b":    fc1_b.reshape(1, -1),
        "fc2_wt":   fc2_w.T.astype(jnp.bfloat16),               # (256, 256)
        "fc2_b":    fc2_b.reshape(1, -1),
        "fc3_wt":   fc3_w.T.astype(jnp.bfloat16),               # (256, 256)
        "fc3_b":    fc3_b.reshape(1, -1),
        "head_wt":  head_wt.astype(jnp.bfloat16),               # (256, 128)
        "head_b":   head_bp,                                    # (1, 128) f32
    }


if __name__ == "__main__":
    B, H, W, N_ACTIONS = 2, 8, 8, 8
    key = jax.random.PRNGKey(0)
    k_param, k_obs = jax.random.split(key)

    params = init_params(k_param, (1, H, W), N_ACTIONS)
    obs = jax.random.randint(k_obs, (B, 1, H, W), 0, NUM_TOKENS, dtype=jnp.int32)

    fwd = jax.jit(cnn_policy_forward, static_argnames=("n_actions",))
    logits, value = fwd(params, obs, n_actions=N_ACTIONS)
    jax.block_until_ready((logits, value))

    assert logits.shape == (B, N_ACTIONS), logits.shape
    assert value.shape == (B, 1), value.shape
    assert bool(jnp.all(jnp.isfinite(logits))) and bool(jnp.all(jnp.isfinite(value)))
    print("KERNEL_OK")
</pallas_src>

<mosaic_0001>
module attributes {stable_mosaic.version = 11 : i64} {
  func.func @_fused_forward_kernel(%arg0: memref<1x128xi32, #tpu.memory_space<vmem>>, %arg1: memref<9x128xf32, #tpu.memory_space<vmem>>, %arg2: memref<8x72xf32, #tpu.memory_space<vmem>>, %arg3: memref<8x1xf32, #tpu.memory_space<vmem>>, %arg4: memref<8x72xf32, #tpu.memory_space<vmem>>, %arg5: memref<8x1xf32, #tpu.memory_space<vmem>>, %arg6: memref<384x256xbf16, #tpu.memory_space<vmem>>, %arg7: memref<1x256xf32, #tpu.memory_space<vmem>>, %arg8: memref<256x256xbf16, #tpu.memory_space<vmem>>, %arg9: memref<1x256xf32, #tpu.memory_space<vmem>>, %arg10: memref<256x256xbf16, #tpu.memory_space<vmem>>, %arg11: memref<1x256xf32, #tpu.memory_space<vmem>>, %arg12: memref<256x128xbf16, #tpu.memory_space<vmem>>, %arg13: memref<1x128xf32, #tpu.memory_space<vmem>>, %arg14: memref<2x128xf32, #tpu.memory_space<vmem>>) attributes {dimension_semantics = [], scalar_prefetch = 0 : i64, scratch_operands = 0 : i64, tpu.core_type = #tpu.core_type<tc>} {
    %c0 = arith.constant 0 : index
    %c0_0 = arith.constant 0 : index
    %0 = vector.load %arg1[%c0, %c0_0] : memref<9x128xf32, #tpu.memory_space<vmem>>, vector<9x128xf32>
    %1 = tpu.iota {dimensions = array<i32: 0>} : vector<8x128xi32>
    %c0_1 = arith.constant 0 : index
    %c0_2 = arith.constant 0 : index
    %2 = vector.load %arg0[%c0_1, %c0_2] : memref<1x128xi32, #tpu.memory_space<vmem>>, vector<1x128xi32>
    %3 = vector.broadcast %2 : vector<1x128xi32> to vector<8x128xi32>
    %4 = arith.cmpi eq, %3, %1 : vector<8x128xi32>
    %5 = arith.extui %4 : vector<8x128xi1> to vector<8x128xi32>
    %6 = arith.sitofp %5 : vector<8x128xi32> to vector<8x128xf32>
    %c0_3 = arith.constant 0 : index
    %c0_4 = arith.constant 0 : index
    %7 = vector.load %arg2[%c0_3, %c0_4] : memref<8x72xf32, #tpu.memory_space<vmem>>, vector<8x72xf32>
    %c9_i32 = arith.constant 9 : i32
    %8 = tpu.dynamic_rotate %6 by %c9_i32 dim 1 : vector<8x128xf32>, i32 -> vector<8x128xf32>
    %9 = vector.extract_strided_slice %0 {offsets = [0, 0], sizes = [1, 128], strides = [1, 1]} : vector<9x128xf32> to vector<1x128xf32>
    %10 = vector.broadcast %9 : vector<1x128xf32> to vector<8x128xf32>
    %11 = arith.mulf %8, %10 : vector<8x128xf32>
    %c8_i32 = arith.constant 8 : i32
    %12 = tpu.dynamic_rotate %6 by %c8_i32 dim 1 : vector<8x128xf32>, i32 -> vector<8x128xf32>
    %13 = vector.extract_strided_slice %0 {offsets = [1, 0], sizes = [1, 128], strides = [1, 1]} : vector<9x128xf32> to vector<1x128xf32>
    %14 = vector.broadcast %13 : vector<1x128xf32> to vector<8x128xf32>
    %15 = arith.mulf %12, %14 : vector<8x128xf32>
    %c7_i32 = arith.constant 7 : i32
    %16 = tpu.dynamic_rotate %6 by %c7_i32 dim 1 : vector<8x128xf32>, i32 -> vector<8x128xf32>
    %17 = vector.extract_strided_slice %0 {offsets = [2, 0], sizes = [1, 128], strides = [1, 1]} : vector<9x128xf32> to vector<1x128xf32>
    %18 = vector.broadcast %17 : vector<1x128xf32> to vector<8x128xf32>
    %19 = arith.mulf %16, %18 : vector<8x128xf32>
    %c1_i32 = arith.constant 1 : i32
    %20 = tpu.dynamic_rotate %6 by %c1_i32 dim 1 : vector<8x128xf32>, i32 -> vector<8x128xf32>
    %21 = vector.extract_strided_slice %0 {offsets = [3, 0], sizes = [1, 128], strides = [1, 1]} : vector<9x128xf32> to vector<1x128xf32>
    %22 = vector.broadcast %21 : vector<1x128xf32> to vector<8x128xf32>
    %23 = arith.mulf %20, %22 : vector<8x128xf32>
    %c127_i32 = arith.constant 127 : i32
    %24 = tpu.dynamic_rotate %6 by %c127_i32 dim 1 : vector<8x128xf32>, i32 -> vector<8x128xf32>
    %25 = vector.extract_strided_slice %0 {offsets = [5, 0], sizes = [1, 128], strides = [1, 1]} : vector<9x128xf32> to vector<1x128xf32>
    %26 = vector.broadcast %25 : vector<1x128xf32> to vector<8x128xf32>
    %27 = arith.mulf %24, %26 : vector<8x128xf32>
    %c121_i32 = arith.constant 121 : i32
    %28 = tpu.dynamic_rotate %6 by %c121_i32 dim 1 : vector<8x128xf32>, i32 -> vector<8x128xf32>
    %29 = vector.extract_strided_slice %0 {offsets = [6, 0], sizes = [1, 128], strides = [1, 1]} : vector<9x128xf32> to vector<1x128xf32>
    %30 = vector.broadcast %29 : vector<1x128xf32> to vector<8x128xf32>
    %31 = arith.mulf %28, %30 : vector<8x128xf32>
    %c120_i32 = arith.constant 120 : i32
    %32 = tpu.dynamic_rotate %6 by %c120_i32 dim 1 : vector<8x128xf32>, i32 -> vector<8x128xf32>
    %33 = vector.extract_strided_slice %0 {offsets = [7, 0], sizes = [1, 128], strides = [1, 1]} : vector<9x128xf32> to vector<1x128xf32>
    %34 = vector.broadcast %33 : vector<1x128xf32> to vector<8x128xf32>
    %35 = arith.mulf %32, %34 : vector<8x128xf32>
    %c119_i32 = arith.constant 119 : i32
    %36 = tpu.dynamic_rotate %6 by %c119_i32 dim 1 : vector<8x128xf32>, i32 -> vector<8x128xf32>
    %37 = vector.extract_strided_slice %0 {offsets = [8, 0], sizes = [1, 128], strides = [1, 1]} : vector<9x128xf32> to vector<1x128xf32>
    %38 = vector.broadcast %37 : vector<1x128xf32> to vector<8x128xf32>
    %39 = arith.mulf %36, %38 : vector<8x128xf32>
    %40 = tpu.concatenate %11, %15, %19, %23, %6, %27, %31, %35, %39 in 0 : vector<8x128xf32>, vector<8x128xf32>, vector<8x128xf32>, vector<8x128xf32>, vector<8x128xf32>, vector<8x128xf32>, vector<8x128xf32>, vector<8x128xf32>, vector<8x128xf32> -> vector<72x128xf32>
    %cst = arith.constant dense<0.000000e+00> : vector<8x128xf32>
    %41 = tpu.matmul %7, %40, %cst {dimension_numbers = #tpu.dot_dimension_numbers<[1], [0], [0], [1], [0, 0, 1, 1], [], []>} : vector<8x72xf32>, vector<72x128xf32>, vector<8x128xf32> -> vector<8x128xf32>
    %c0_5 = arith.constant 0 : index
    %c0_6 = arith.constant 0 : index
    %42 = vector.load %arg3[%c0_5, %c0_6] : memref<8x1xf32, #tpu.memory_space<vmem>>, vector<8x1xf32>
    %43 = vector.broadcast %42 : vector<8x1xf32> to vector<8x128xf32>
    %44 = arith.addf %41, %43 : vector<8x128xf32>
    %cst_7 = arith.constant 0.000000e+00 : f32
    %45 = vector.broadcast %cst_7 : f32 to vector<8x128xf32>
    %46 = arith.maximumf %44, %45 : vector<8x128xf32>
    %c0_8 = arith.constant 0 : index
    %c0_9 = arith.constant 0 : index
    %47 = vector.load %arg4[%c0_8, %c0_9] : memref<8x72xf32, #tpu.memory_space<vmem>>, vector<8x72xf32>
    %c9_i32_10 = arith.constant 9 : i32
    %48 = tpu.dynamic_rotate %46 by %c9_i32_10 dim 1 : vector<8x128xf32>, i32 -> vector<8x128xf32>
    %49 = vector.extract_strided_slice %0 {offsets = [0, 0], sizes = [1, 128], strides = [1, 1]} : vector<9x128xf32> to vector<1x128xf32>
    %50 = vector.broadcast %49 : vector<1x128xf32> to vector<8x128xf32>
    %51 = arith.mulf %48, %50 : vector<8x128xf32>
    %c8_i32_11 = arith.constant 8 : i32
    %52 = tpu.dynamic_rotate %46 by %c8_i32_11 dim 1 : vector<8x128xf32>, i32 -> vector<8x128xf32>
    %53 = vector.extract_strided_slice %0 {offsets = [1, 0], sizes = [1, 128], strides = [1, 1]} : vector<9x128xf32> to vector<1x128xf32>
    %54 = vector.broadcast %53 : vector<1x128xf32> to vector<8x128xf32>
    %55 = arith.mulf %52, %54 : vector<8x128xf32>
    %c7_i32_12 = arith.constant 7 : i32
    %56 = tpu.dynamic_rotate %46 by %c7_i32_12 dim 1 : vector<8x128xf32>, i32 -> vector<8x128xf32>
    %57 = vector.extract_strided_slice %0 {offsets = [2, 0], sizes = [1, 128], strides = [1, 1]} : vector<9x128xf32> to vector<1x128xf32>
    %58 = vector.broadcast %57 : vector<1x128xf32> to vector<8x128xf32>
    %59 = arith.mulf %56, %58 : vector<8x128xf32>
    %c1_i32_13 = arith.constant 1 : i32
    %60 = tpu.dynamic_rotate %46 by %c1_i32_13 dim 1 : vector<8x128xf32>, i32 -> vector<8x128xf32>
    %61 = vector.extract_strided_slice %0 {offsets = [3, 0], sizes = [1, 128], strides = [1, 1]} : vector<9x128xf32> to vector<1x128xf32>
    %62 = vector.broadcast %61 : vector<1x128xf32> to vector<8x128xf32>
    %63 = arith.mulf %60, %62 : vector<8x128xf32>
    %c127_i32_14 = arith.constant 127 : i32
    %64 = tpu.dynamic_rotate %46 by %c127_i32_14 dim 1 : vector<8x128xf32>, i32 -> vector<8x128xf32>
    %65 = vector.extract_strided_slice %0 {offsets = [5, 0], sizes = [1, 128], strides = [1, 1]} : vector<9x128xf32> to vector<1x128xf32>
    %66 = vector.broadcast %65 : vector<1x128xf32> to vector<8x128xf32>
    %67 = arith.mulf %64, %66 : vector<8x128xf32>
    %c121_i32_15 = arith.constant 121 : i32
    %68 = tpu.dynamic_rotate %46 by %c121_i32_15 dim 1 : vector<8x128xf32>, i32 -> vector<8x128xf32>
    %69 = vector.extract_strided_slice %0 {offsets = [6, 0], sizes = [1, 128], strides = [1, 1]} : vector<9x128xf32> to vector<1x128xf32>
    %70 = vector.broadcast %69 : vector<1x128xf32> to vector<8x128xf32>
    %71 = arith.mulf %68, %70 : vector<8x128xf32>
    %c120_i32_16 = arith.constant 120 : i32
    %72 = tpu.dynamic_rotate %46 by %c120_i32_16 dim 1 : vector<8x128xf32>, i32 -> vector<8x128xf32>
    %73 = vector.extract_strided_slice %0 {offsets = [7, 0], sizes = [1, 128], strides = [1, 1]} : vector<9x128xf32> to vector<1x128xf32>
    %74 = vector.broadcast %73 : vector<1x128xf32> to vector<8x128xf32>
    %75 = arith.mulf %72, %74 : vector<8x128xf32>
    %c119_i32_17 = arith.constant 119 : i32
    %76 = tpu.dynamic_rotate %46 by %c119_i32_17 dim 1 : vector<8x128xf32>, i32 -> vector<8x128xf32>
    %77 = vector.extract_strided_slice %0 {offsets = [8, 0], sizes = [1, 128], strides = [1, 1]} : vector<9x128xf32> to vector<1x128xf32>
    %78 = vector.broadcast %77 : vector<1x128xf32> to vector<8x128xf32>
    %79 = arith.mulf %76, %78 : vector<8x128xf32>
    %80 = tpu.concatenate %51, %55, %59, %63, %46, %67, %71, %75, %79 in 0 : vector<8x128xf32>, vector<8x128xf32>, vector<8x128xf32>, vector<8x128xf32>, vector<8x128xf32>, vector<8x128xf32>, vector<8x128xf32>, vector<8x128xf32>, vector<8x128xf32> -> vector<72x128xf32>
    %cst_18 = arith.constant dense<0.000000e+00> : vector<8x128xf32>
    %81 = tpu.matmul %47, %80, %cst_18 {dimension_numbers = #tpu.dot_dimension_numbers<[1], [0], [0], [1], [0, 0, 1, 1], [], []>} : vector<8x72xf32>, vector<72x128xf32>, vector<8x128xf32> -> vector<8x128xf32>
    %c0_19 = arith.constant 0 : index
    %c0_20 = arith.constant 0 : index
    %82 = vector.load %arg5[%c0_19, %c0_20] : memref<8x1xf32, #tpu.memory_space<vmem>>, vector<8x1xf32>
    %83 = vector.broadcast %82 : vector<8x1xf32> to vector<8x128xf32>
    %84 = arith.addf %81, %83 : vector<8x128xf32>
    %cst_21 = arith.constant 0.000000e+00 : f32
    %85 = vector.broadcast %cst_21 : f32 to vector<8x128xf32>
    %86 = arith.maximumf %84, %85 : vector<8x128xf32>
    %87 = vector.extract_strided_slice %86 {offsets = [0, 0], sizes = [1, 64], strides = [1, 1]} : vector<8x128xf32> to vector<1x64xf32>
    %88 = vector.extract_strided_slice %86 {offsets = [1, 0], sizes = [1, 64], strides = [1, 1]} : vector<8x128xf32> to vector<1x64xf32>
    %89 = vector.extract_strided_slice %86 {offsets = [2, 0], sizes = [1, 64], strides = [1, 1]} : vector<8x128xf32> to vector<1x64xf32>
    %90 = vector.extract_strided_slice %86 {offsets = [3, 0], sizes = [1, 64], strides = [1, 1]} : vector<8x128xf32> to vector<1x64xf32>
    %91 = vector.extract_strided_slice %86 {offsets = [4, 0], sizes = [1, 64], strides = [1, 1]} : vector<8x128xf32> to vector<1x64xf32>
    %92 = vector.extract_strided_slice %86 {offsets = [5, 0], sizes = [1, 64], strides = [1, 1]} : vector<8x128xf32> to vector<1x64xf32>
    %93 = tpu.concatenate %87, %88, %89, %90, %91, %92 in 1 : vector<1x64xf32>, vector<1x64xf32>, vector<1x64xf32>, vector<1x64xf32>, vector<1x64xf32>, vector<1x64xf32> -> vector<1x384xf32>
    %94 = vector.extract_strided_slice %86 {offsets = [0, 64], sizes = [1, 64], strides = [1, 1]} : vector<8x128xf32> to vector<1x64xf32>
    %95 = vector.extract_strided_slice %86 {offsets = [1, 64], sizes = [1, 64], strides = [1, 1]} : vector<8x128xf32> to vector<1x64xf32>
    %96 = vector.extract_strided_slice %86 {offsets = [2, 64], sizes = [1, 64], strides = [1, 1]} : vector<8x128xf32> to vector<1x64xf32>
    %97 = vector.extract_strided_slice %86 {offsets = [3, 64], sizes = [1, 64], strides = [1, 1]} : vector<8x128xf32> to vector<1x64xf32>
    %98 = vector.extract_strided_slice %86 {offsets = [4, 64], sizes = [1, 64], strides = [1, 1]} : vector<8x128xf32> to vector<1x64xf32>
    %99 = vector.extract_strided_slice %86 {offsets = [5, 64], sizes = [1, 64], strides = [1, 1]} : vector<8x128xf32> to vector<1x64xf32>
    %100 = tpu.concatenate %94, %95, %96, %97, %98, %99 in 1 : vector<1x64xf32>, vector<1x64xf32>, vector<1x64xf32>, vector<1x64xf32>, vector<1x64xf32>, vector<1x64xf32> -> vector<1x384xf32>
    %101 = tpu.concatenate %93, %100 in 0 : vector<1x384xf32>, vector<1x384xf32> -> vector<2x384xf32>
    %102 = arith.truncf %101 : vector<2x384xf32> to vector<2x384xbf16>
    %c0_22 = arith.constant 0 : index
    %c0_23 = arith.constant 0 : index
    %103 = vector.load %arg6[%c0_22, %c0_23] : memref<384x256xbf16, #tpu.memory_space<vmem>>, vector<384x256xbf16>
    %cst_24 = arith.constant dense<0.000000e+00> : vector<2x256xf32>
    %104 = tpu.matmul %102, %103, %cst_24 {dimension_numbers = #tpu.dot_dimension_numbers<[1], [0], [0], [1], [0, 0, 1, 1], [], []>} : vector<2x384xbf16>, vector<384x256xbf16>, vector<2x256xf32> -> vector<2x256xf32>
    %c0_25 = arith.constant 0 : index
    %c0_26 = arith.constant 0 : index
    %105 = vector.load %arg7[%c0_25, %c0_26] : memref<1x256xf32, #tpu.memory_space<vmem>>, vector<1x256xf32>
    %106 = vector.broadcast %105 : vector<1x256xf32> to vector<2x256xf32>
    %107 = arith.addf %104, %106 : vector<2x256xf32>
    %cst_27 = arith.constant 0.000000e+00 : f32
    %108 = vector.broadcast %cst_27 : f32 to vector<2x256xf32>
    %109 = arith.maximumf %107, %108 : vector<2x256xf32>
    %110 = arith.truncf %109 : vector<2x256xf32> to vector<2x256xbf16>
    %c0_28 = arith.constant 0 : index
    %c0_29 = arith.constant 0 : index
    %111 = vector.load %arg8[%c0_28, %c0_29] : memref<256x256xbf16, #tpu.memory_space<vmem>>, vector<256x256xbf16>
    %cst_30 = arith.constant dense<0.000000e+00> : vector<2x256xf32>
    %112 = tpu.matmul %110, %111, %cst_30 {dimension_numbers = #tpu.dot_dimension_numbers<[1], [0], [0], [1], [0, 0, 1, 1], [], []>} : vector<2x256xbf16>, vector<256x256xbf16>, vector<2x256xf32> -> vector<2x256xf32>
    %c0_31 = arith.constant 0 : index
    %c0_32 = arith.constant 0 : index
    %113 = vector.load %arg9[%c0_31, %c0_32] : memref<1x256xf32, #tpu.memory_space<vmem>>, vector<1x256xf32>
    %114 = vector.broadcast %113 : vector<1x256xf32> to vector<2x256xf32>
    %115 = arith.addf %112, %114 : vector<2x256xf32>
    %cst_33 = arith.constant 0.000000e+00 : f32
    %116 = vector.broadcast %cst_33 : f32 to vector<2x256xf32>
    %117 = arith.maximumf %115, %116 : vector<2x256xf32>
    %118 = arith.truncf %117 : vector<2x256xf32> to vector<2x256xbf16>
    %c0_34 = arith.constant 0 : index
    %c0_35 = arith.constant 0 : index
    %119 = vector.load %arg10[%c0_34, %c0_35] : memref<256x256xbf16, #tpu.memory_space<vmem>>, vector<256x256xbf16>
    %cst_36 = arith.constant dense<0.000000e+00> : vector<2x256xf32>
    %120 = tpu.matmul %118, %119, %cst_36 {dimension_numbers = #tpu.dot_dimension_numbers<[1], [0], [0], [1], [0, 0, 1, 1], [], []>} : vector<2x256xbf16>, vector<256x256xbf16>, vector<2x256xf32> -> vector<2x256xf32>
    %c0_37 = arith.constant 0 : index
    %c0_38 = arith.constant 0 : index
    %121 = vector.load %arg11[%c0_37, %c0_38] : memref<1x256xf32, #tpu.memory_space<vmem>>, vector<1x256xf32>
    %122 = vector.broadcast %121 : vector<1x256xf32> to vector<2x256xf32>
    %123 = arith.addf %120, %122 : vector<2x256xf32>
    %cst_39 = arith.constant 0.000000e+00 : f32
    %124 = vector.broadcast %cst_39 : f32 to vector<2x256xf32>
    %125 = arith.maximumf %123, %124 : vector<2x256xf32>
    %126 = arith.truncf %125 : vector<2x256xf32> to vector<2x256xbf16>
    %c0_40 = arith.constant 0 : index
    %c0_41 = arith.constant 0 : index
    %127 = vector.load %arg12[%c0_40, %c0_41] : memref<256x128xbf16, #tpu.memory_space<vmem>>, vector<256x128xbf16>
    %cst_42 = arith.constant dense<0.000000e+00> : vector<2x128xf32>
    %128 = tpu.matmul %126, %127, %cst_42 {dimension_numbers = #tpu.dot_dimension_numbers<[1], [0], [0], [1], [0, 0, 1, 1], [], []>} : vector<2x256xbf16>, vector<256x128xbf16>, vector<2x128xf32> -> vector<2x128xf32>
    %c0_43 = arith.constant 0 : index
    %c0_44 = arith.constant 0 : index
    %129 = vector.load %arg13[%c0_43, %c0_44] : memref<1x128xf32, #tpu.memory_space<vmem>>, vector<1x128xf32>
    %130 = vector.broadcast %129 : vector<1x128xf32> to vector<2x128xf32>
    %131 = arith.addf %128, %130 : vector<2x128xf32>
    %c0_45 = arith.constant 0 : index
    %c0_46 = arith.constant 0 : index
    %132 = vector.load %arg14[%c0_45, %c0_46] : memref<2x128xf32, #tpu.memory_space<vmem>>, vector<2x128xf32>
    tpu.vector_store %arg14[%c0_45, %c0_46], %131 {strides = array<i32>} : memref<2x128xf32, #tpu.memory_space<vmem>>, vector<2x128xf32>,
    return
  }
}

</mosaic_0001>

<llo_original>
// kernel: cnn_policy_forward.1
$region0: #{cnn_policy_forward.1}
  #allocation0 [shape = 'u32[]', space=smem, size = 0x4, offset = 0x4, fixed_abs, tag = 'smem constant byte address 0x4 - core index']
  #allocation1 [shape = 'u32[72,128]{1,0:T(1,128)}', space=vmem, size = 0x9000, scoped, tag = 'internal scratch']
  %s0 = inlined_call_operand.vmem [shape: s32[1,128], index: 0, kind: input, shape index: {}]
  %s1 = inlined_call_operand.vmem [shape: f32[9,128], index: 1, kind: input, shape index: {}]
  %s2 = inlined_call_operand.vmem [shape: f32[8,72], index: 2, kind: input, shape index: {}]
  %s3 = inlined_call_operand.vmem [shape: f32[8,1], index: 3, kind: input, shape index: {}]
  %s4 = inlined_call_operand.vmem [shape: f32[8,72], index: 4, kind: input, shape index: {}]
  %s5 = inlined_call_operand.vmem [shape: f32[8,1], index: 5, kind: input, shape index: {}]
  %s6 = inlined_call_operand.hbm [shape: bf16[384,256], index: 6, kind: input, shape index: {}]
  %s7 = inlined_call_operand.vmem [shape: f32[1,256], index: 7, kind: input, shape index: {}]
  %s8 = inlined_call_operand.hbm [shape: bf16[256,256], index: 8, kind: input, shape index: {}]
  %s9 = inlined_call_operand.vmem [shape: f32[1,256], index: 9, kind: input, shape index: {}]
  %s10 = inlined_call_operand.hbm [shape: bf16[256,256], index: 10, kind: input, shape index: {}]
  %s11 = inlined_call_operand.vmem [shape: f32[1,256], index: 11, kind: input, shape index: {}]
  %s12 = inlined_call_operand.hbm [shape: bf16[256,128], index: 12, kind: input, shape index: {}]
  %s13 = inlined_call_operand.vmem [shape: f32[1,128], index: 13, kind: input, shape index: {}]
  %s14 = inlined_call_operand.vmem [shape: f32[2,128], index: 14, kind: output, shape index: {}]
  %s15 = sld [smem:[#allocation0]]
  $region82: #{cnn_policy_forward.1} parent=0
    _
  %s17 = ssub.s32 1, %s15
  %s18 = scalar_select 0, %s17, %s15
  $region1: #{cnn_policy_forward.1} parent=0
    #allocation2 [shape = 'u8[196608]{0}', space=vmem, size = 0x30000, scoped, tag = 'input window, operand 6, single buffered']
    #allocation3 [shape = 's32[1]{0}', space=sflag, size = 0x4, scoped, tag = 'scoped memory for cnn_policy_forward.1']
    #allocation4 [shape = 'u8[131072]{0}', space=vmem, size = 0x20000, scoped, tag = 'input window, operand 8, single buffered']
    #allocation5 [shape = 's32[1]{0}', space=sflag, size = 0x4, scoped, tag = 'scoped memory for cnn_policy_forward.1']
    #allocation6 [shape = 'u8[131072]{0}', space=vmem, size = 0x20000, scoped, tag = 'input window, operand 10, single buffered']
    #allocation7 [shape = 'u8[65536]{0}', space=vmem, size = 0x10000, scoped, tag = 'input window, operand 12, single buffered']
    #allocation8 [shape = 's32[1]{0}', space=sflag, size = 0x4, scoped, tag = 'scoped memory for cnn_policy_forward.1']
    %19 = vsyncpa [#allocation3], 0
    %20 = vsyncpa [#allocation5], 0
    %21 = vsyncpa [#allocation8], 0
    // Predicated region
    $region2: #{cnn_policy_forward.1} parent=1 // pred_check
      _
    $region3: #{cnn_policy_forward.1} parent=1 // pred_check_branch
      %23 = sbr.rel (0) target = $region5
    $region4: #{cnn_policy_forward.1} parent=1 // pred_region
      _
    $region5: #{cnn_policy_forward.1} parent=1 // pred_fallthru
      _
    // Predicated region
    $region6: #{cnn_policy_forward.1} parent=1 // pred_check
      _
    $region7: #{cnn_policy_forward.1} parent=1 // pred_check_branch
      %25 = sbr.rel (0) target = $region9
    $region8: #{cnn_policy_forward.1} parent=1 // pred_region
      _
    $region9: #{cnn_policy_forward.1} parent=1 // pred_fallthru
      _
    // Predicated region
    $region10: #{cnn_policy_forward.1} parent=1 // pred_check
      _
    $region11: #{cnn_policy_forward.1} parent=1 // pred_check_branch
      %27 = sbr.rel (0) target = $region13
    $region12: #{cnn_policy_forward.1} parent=1 // pred_region
      _
    $region13: #{cnn_policy_forward.1} parent=1 // pred_fallthru
      _
    // Predicated region
    $region14: #{cnn_policy_forward.1} parent=1 // pred_check
      _
    $region15: #{cnn_policy_forward.1} parent=1 // pred_check_branch
      %29 = sbr.rel (0) target = $region17
    $region16: #{cnn_policy_forward.1} parent=1 // pred_region
      _
    $region17: #{cnn_policy_forward.1} parent=1 // pred_fallthru
      _
    // Predicated region
    $region18: #{cnn_policy_forward.1} parent=1 // pred_check
      _
    $region19: #{cnn_policy_forward.1} parent=1 // pred_check_branch
      %31 = sbr.rel (0) target = $region21
    $region20: #{cnn_policy_forward.1} parent=1 // pred_region
      _
    $region21: #{cnn_policy_forward.1} parent=1 // pred_fallthru
      _
    // Predicated region
    $region22: #{cnn_policy_forward.1} parent=1 // pred_check
      _
    $region23: #{cnn_policy_forward.1} parent=1 // pred_check_branch
      %33 = sbr.rel (0) target = $region25
    $region24: #{cnn_policy_forward.1} parent=1 // pred_region
      _
    $region25: #{cnn_policy_forward.1} parent=1 // pred_fallthru
      _
    // Predicated region
    $region26: #{cnn_policy_forward.1} parent=1 // pred_check
      _
    $region27: #{cnn_policy_forward.1} parent=1 // pred_check_branch
      %35 = sbr.rel (0) target = $region29
    $region28: #{cnn_policy_forward.1} parent=1 // pred_region
      %37 = vsyncadd [#allocation3], 0
      %s38 = sshll.u32 %s6, 4
      %s39 = int_to_ptr.hbm [resolvable:$true] %s38
      %s40 = sshll.u32 [#allocation2], 4
      %s41 = int_to_ptr.vmem [resolvable:$true] %s40
      %46 = dma.hbm_to_vmem [thread:$0]  %s39, 6144, %s41, [#allocation3], 128, 128, 8
    $region29: #{cnn_policy_forward.1} parent=1 // pred_fallthru
      _
    // Predicated region
    $region30: #{cnn_policy_forward.1} parent=1 // pred_check
      _
    $region31: #{cnn_policy_forward.1} parent=1 // pred_check_branch
      %48 = sbr.rel (0) target = $region33
    $region32: #{cnn_policy_forward.1} parent=1 // pred_region
      _
    $region33: #{cnn_policy_forward.1} parent=1 // pred_fallthru
      _
    // Predicated region
    $region34: #{cnn_policy_forward.1} parent=1 // pred_check
      _
    $region35: #{cnn_policy_forward.1} parent=1 // pred_check_branch
      %50 = sbr.rel (0) target = $region37
    $region36: #{cnn_policy_forward.1} parent=1 // pred_region
      %52 = vsyncadd [#allocation5], 0
      %s53 = sshll.u32 %s8, 4
      %s54 = int_to_ptr.hbm [resolvable:$true] %s53
      %s55 = sshll.u32 [#allocation4], 4
      %s56 = int_to_ptr.vmem [resolvable:$true] %s55
      %61 = dma.hbm_to_vmem [thread:$0]  %s54, 4096, %s56, [#allocation5], 128, 128, 8
    $region37: #{cnn_policy_forward.1} parent=1 // pred_fallthru
      _
    // Predicated region
    $region38: #{cnn_policy_forward.1} parent=1 // pred_check
      _
    $region39: #{cnn_policy_forward.1} parent=1 // pred_check_branch
      %63 = sbr.rel (0) target = $region41
    $region40: #{cnn_policy_forward.1} parent=1 // pred_region
      _
    $region41: #{cnn_policy_forward.1} parent=1 // pred_fallthru
      _
    // Predicated region
    $region42: #{cnn_policy_forward.1} parent=1 // pred_check
      _
    $region43: #{cnn_policy_forward.1} parent=1 // pred_check_branch
      %65 = sbr.rel (0) target = $region45
    $region44: #{cnn_policy_forward.1} parent=1 // pred_region
      %67 = vsyncadd [#allocation5], 0
      %s68 = sshll.u32 %s10, 4
      %s69 = int_to_ptr.hbm [resolvable:$true] %s68
      %s70 = sshll.u32 [#allocation6], 4
      %s71 = int_to_ptr.vmem [resolvable:$true] %s70
      %76 = dma.hbm_to_vmem [thread:$0]  %s69, 4096, %s71, [#allocation5], 128, 128, 8
    $region45: #{cnn_policy_forward.1} parent=1 // pred_fallthru
      _
    // Predicated region
    $region46: #{cnn_policy_forward.1} parent=1 // pred_check
      _
    $region47: #{cnn_policy_forward.1} parent=1 // pred_check_branch
      %78 = sbr.rel (0) target = $region49
    $region48: #{cnn_policy_forward.1} parent=1 // pred_region
      _
    $region49: #{cnn_policy_forward.1} parent=1 // pred_fallthru
      _
    // Predicated region
    $region50: #{cnn_policy_forward.1} parent=1 // pred_check
      _
    $region51: #{cnn_policy_forward.1} parent=1 // pred_check_branch
      %80 = sbr.rel (0) target = $region53
    $region52: #{cnn_policy_forward.1} parent=1 // pred_region
      %82 = vsyncadd [#allocation8], 0
      %s83 = sshll.u32 %s12, 4
      %s84 = int_to_ptr.hbm [resolvable:$true] %s83
      %s85 = sshll.u32 [#allocation7], 4
      %s86 = int_to_ptr.vmem [resolvable:$true] %s85
      %91 = dma.hbm_to_vmem [thread:$0]  %s84, 2048, %s86, [#allocation8], 64, 64, 4
    $region53: #{cnn_policy_forward.1} parent=1 // pred_fallthru
      _
    // Predicated region
    $region54: #{cnn_policy_forward.1} parent=1 // pred_check
      _
    $region55: #{cnn_policy_forward.1} parent=1 // pred_check_branch
      %93 = sbr.rel (0) target = $region57
    $region56: #{cnn_policy_forward.1} parent=1 // pred_region
      _
    $region57: #{cnn_policy_forward.1} parent=1 // pred_fallthru
      _
    // Predicated region
    $region58: #{cnn_policy_forward.1} parent=1 // pred_check
      _
    $region59: #{cnn_policy_forward.1} parent=1 // pred_check_branch
      %95 = sbr.rel (0) target = $region61
    $region60: #{cnn_policy_forward.1} parent=1 // pred_region
      %97 = dma.done [#allocation3], 6144
    $region61: #{cnn_policy_forward.1} parent=1 // pred_fallthru
      _
    // Predicated region
    $region62: #{cnn_policy_forward.1} parent=1 // pred_check
      _
    $region63: #{cnn_policy_forward.1} parent=1 // pred_check_branch
      %99 = sbr.rel (0) target = $region65
    $region64: #{cnn_policy_forward.1} parent=1 // pred_region
      %101 = dma.done [#allocation5], 4096
    $region65: #{cnn_policy_forward.1} parent=1 // pred_fallthru
      _
    // Predicated region
    $region66: #{cnn_policy_forward.1} parent=1 // pred_check
      _
    $region67: #{cnn_policy_forward.1} parent=1 // pred_check_branch
      %103 = sbr.rel (0) target = $region69
    $region68: #{cnn_policy_forward.1} parent=1 // pred_region
      %105 = dma.done [#allocation5], 4096
    $region69: #{cnn_policy_forward.1} parent=1 // pred_fallthru
      _
    // Predicated region
    $region70: #{cnn_policy_forward.1} parent=1 // pred_check
      _
    $region71: #{cnn_policy_forward.1} parent=1 // pred_check_branch
      %107 = sbr.rel (0) target = $region73
    $region72: #{cnn_policy_forward.1} parent=1 // pred_region
      %109 = dma.done [#allocation8], 2048
    $region73: #{cnn_policy_forward.1} parent=1 // pred_fallthru
      _
    %v110 = vld [vmem:[%s1] sm:$0xff]
    %v111 = vld [vmem:[%s1 + $0x8] sm:$0x1]
    %v112 = vlaneseq
    %v113 = vshrl.u32 %v112, 7
    %v114 = vld [vmem:[%s0] sm:$0x1]
    %v115 = vperm.slane %v114, 0
    %vm116 = vcmp.eq.s32.totalorder %v115, %v113
    %v117 = vsel %vm116, 1, 0
    %v118 = vcvt.s32.f32 %v117
    %v119 = vld [vmem:[%s2] sm:$0xff]
    %120 = vrot.lane.b32.xlu0 %v118, 9
    %v121 = vpop.permute.xlu0 %120
    %v122 = vperm.slane %v110, 0
    %v123 = vmul.f32 %v121, %v122
    %124 = vrot.lane.b32.xlu0 %v118, 8
    %v125 = vpop.permute.xlu0 %124
    %v126 = vperm.slane %v110, 1
    %v127 = vmul.f32 %v125, %v126
    %128 = vrot.lane.b32.xlu0 %v118, 7
    %v129 = vpop.permute.xlu0 %128
    %v130 = vperm.slane %v110, 2
    %v131 = vmul.f32 %v129, %v130
    %132 = vrot.lane.b32.xlu0 %v118, 1
    %v133 = vpop.permute.xlu0 %132
    %v134 = vperm.slane %v110, 3
    %v135 = vmul.f32 %v133, %v134
    %136 = vrot.lane.b32.xlu0 %v118, 127
    %v137 = vpop.permute.xlu0 %136
    %v138 = vperm.slane %v110, 5
    %v139 = vmul.f32 %v137, %v138
    %140 = vrot.lane.b32.xlu0 %v118, 121
    %v141 = vpop.permute.xlu0 %140
    %v142 = vperm.slane %v110, 6
    %v143 = vmul.f32 %v141, %v142
    %144 = vrot.lane.b32.xlu0 %v118, 120
    %v145 = vpop.permute.xlu0 %144
    %v146 = vperm.slane %v110, 7
    %v147 = vmul.f32 %v145, %v146
    %148 = vrot.lane.b32.xlu0 %v118, 119
    %v149 = vpop.permute.xlu0 %148
    %v150 = vperm.slane %v111, 0
    %v151 = vmul.f32 %v149, %v150
    %v152 = vld [vmem:[%s3] sm:$0xff]
    %154 = vset.pattern.permute.xlu0 0
    %155 = vperm.xlu0 %154, %v152
    %v156 = vpop.permute.xlu0 %155
    %vm158 = vcmask 588800
    %v160 = vsel %vm158, %v119, 0
    %162 = vmatpush.msra.mxu0 0.0
    %163 = vmatpush.msra.mxu0 0.0
    %164 = vmatpush.msra.mxu0 0.0
    %165 = vmatpush.msra.mxu0 0.0
    %166 = vmatpush.msra.mxu0 0.0
    %167 = vmatpush.msra.mxu0 0.0
    %168 = vmatpush.msra.mxu0 0.0
    %169 = vmatpush.msra.mxu0 %v151
    %170 = vmatpush.msra.mxu0 %v147
    %171 = vmatpush.msra.mxu0 %v143
    %172 = vmatpush.msra.mxu0 %v139
    %173 = vmatpush.msra.mxu0 %v118
    %174 = vmatpush.msra.mxu0 %v135
    %175 = vmatpush.msra.mxu0 %v131
    %176 = vmatpush.msra.mxu0 %v127
    %177 = vmatpush.msra.mxu0 %v123
    %178 = vmatmul.f32.gmra.mxu0 %v160
    %v179 = vpop.f32.mrf.mxu0
    %v180 = vadd.f32 %v156, %v179
    %181 = vdwg.mxu0
    %v182 = vmax.f32 %v180, 0.0
    %v183 = vld [vmem:[%s4] sm:$0xff]
    %184 = vrot.lane.b32.xlu0 %v182, 9
    %v185 = vpop.permute.xlu0 %184
    %v186 = vmul.f32 %v185, %v122
    %187 = vrot.lane.b32.xlu0 %v182, 8
    %v188 = vpop.permute.xlu0 %187
    %v189 = vmul.f32 %v188, %v126
    %190 = vrot.lane.b32.xlu0 %v182, 7
    %v191 = vpop.permute.xlu0 %190
    %v192 = vmul.f32 %v191, %v130
    %193 = vrot.lane.b32.xlu0 %v182, 1
    %v194 = vpop.permute.xlu0 %193
    %v195 = vmul.f32 %v194, %v134
    %196 = vrot.lane.b32.xlu0 %v182, 127
    %v197 = vpop.permute.xlu0 %196
    %v198 = vmul.f32 %v197, %v138
    %199 = vrot.lane.b32.xlu0 %v182, 121
    %v200 = vpop.permute.xlu0 %199
    %v201 = vmul.f32 %v200, %v142
    %202 = vrot.lane.b32.xlu0 %v182, 120
    %v203 = vpop.permute.xlu0 %202
    %v204 = vmul.f32 %v203, %v146
    %205 = vrot.lane.b32.xlu0 %v182, 119
    %v206 = vpop.permute.xlu0 %205
    %v207 = vmul.f32 %v206, %v150
    %v208 = vld [vmem:[%s5] sm:$0xff]
    %210 = vset.pattern.permute.xlu0 0
    %211 = vperm.xlu0 %210, %v208
    %v212 = vpop.permute.xlu0 %211
    %v215 = vsel %vm158, %v183, 0
    %217 = vmatpush.msra.mxu0 0.0
    %218 = vmatpush.msra.mxu0 0.0
    %219 = vmatpush.msra.mxu0 0.0
    %220 = vmatpush.msra.mxu0 0.0
    %221 = vmatpush.msra.mxu0 0.0
    %222 = vmatpush.msra.mxu0 0.0
    %223 = vmatpush.msra.mxu0 0.0
    %224 = vmatpush.msra.mxu0 %v207
    %225 = vmatpush.msra.mxu0 %v204
    %226 = vmatpush.msra.mxu0 %v201
    %227 = vmatpush.msra.mxu0 %v198
    %228 = vmatpush.msra.mxu0 %v182
    %229 = vmatpush.msra.mxu0 %v195
    %230 = vmatpush.msra.mxu0 %v192
    %231 = vmatpush.msra.mxu0 %v189
    %232 = vmatpush.msra.mxu0 %v186
    %233 = vmatmul.f32.gmra.mxu0 %v215
    %v234 = vpop.f32.mrf.mxu0
    %v235 = vadd.f32 %v212, %v234
    %236 = vdwg.mxu0
    %v237 = vmax.f32 %v235, 0.0
    %v239 = vrot.slane %v237, 1
    %240 = vrot.lane.b32.xlu0 %v239, 64
    %v241 = vpop.permute.xlu0 %240
    %v243 = vrot.slane %v237, 2
    %v245 = vrot.slane %v237, 3
    %246 = vrot.lane.b32.xlu0 %v245, 64
    %v247 = vpop.permute.xlu0 %246
    %v249 = vrot.slane %v237, 4
    %v251 = vrot.slane %v237, 5
    %252 = vrot.lane.b32.xlu0 %v251, 64
    %v253 = vpop.permute.xlu0 %252
    %vm255 = vcmask 523264
    %v256 = vsel %vm255, %v237, %v241
    %v257 = vsel %vm255, %v243, %v247
    %v258 = vsel %vm255, %v249, %v253
    %259 = vrot.lane.b32.xlu0 %v237, 64
    %v260 = vpop.permute.xlu0 %259
    %263 = vrot.lane.b32.xlu0 %v243, 64
    %v264 = vpop.permute.xlu0 %263
    %267 = vrot.lane.b32.xlu0 %v249, 64
    %v268 = vpop.permute.xlu0 %267
    %v271 = vsel %vm255, %v260, %v239
    %v272 = vsel %vm255, %v264, %v245
    %v273 = vsel %vm255, %v268, %v251
    %v277 = vrot.slane %v271, 7
    %v278 = vrot.slane %v272, 7
    %v279 = vrot.slane %v273, 7
    %vm283 = vcmask 1040384
    %v284 = vsel %vm283, %v256, %v277
    %v285 = vsel %vm283, %v257, %v278
    %v286 = vsel %vm283, %v258, %v279
    %v287 = vpack.c.bf16 %v284, %v284
    %v288 = vpack.c.bf16 %v285, %v285
    %v289 = vpack.c.bf16 %v286, %v286
    %v290 = vld [vmem:[#allocation2] sm:$0xff]
    %v291 = vld [vmem:[#allocation2 + $0x8] sm:$0xff]
    %v292 = vld [vmem:[#allocation2 + $0x10] sm:$0xff]
    %v293 = vld [vmem:[#allocation2 + $0x18] sm:$0xff]
    %v294 = vld [vmem:[#allocation2 + $0x20] sm:$0xff]
    %v295 = vld [vmem:[#allocation2 + $0x28] sm:$0xff]
    %v296 = vld [vmem:[#allocation2 + $0x30] sm:$0xff]
    %v297 = vld [vmem:[#allocation2 + $0x38] sm:$0xff]
    %v298 = vld [vmem:[#allocation2 + $0x40] sm:$0xff]
    %v299 = vld [vmem:[#allocation2 + $0x48] sm:$0xff]
    %v300 = vld [vmem:[#allocation2 + $0x50] sm:$0xff]
    %v301 = vld [vmem:[#allocation2 + $0x58] sm:$0xff]
    %v302 = vld [vmem:[#allocation2 + $0x60] sm:$0xff]
    %v303 = vld [vmem:[#allocation2 + $0x68] sm:$0xff]
    %v304 = vld [vmem:[#allocation2 + $0x70] sm:$0xff]
    %v305 = vld [vmem:[#allocation2 + $0x78] sm:$0xff]
    %v306 = vld [vmem:[#allocation2 + $0x80] sm:$0xff]
    %v307 = vld [vmem:[#allocation2 + $0x88] sm:$0xff]
    %v308 = vld [vmem:[#allocation2 + $0x90] sm:$0xff]
    %v309 = vld [vmem:[#allocation2 + $0x98] sm:$0xff]
    %v310 = vld [vmem:[#allocation2 + $0xa0] sm:$0xff]
    %v311 = vld [vmem:[#allocation2 + $0xa8] sm:$0xff]
    %v312 = vld [vmem:[#allocation2 + $0xb0] sm:$0xff]
    %v313 = vld [vmem:[#allocation2 + $0xb8] sm:$0xff]
    %v314 = vld [vmem:[#allocation2 + $0xc0] sm:$0xff]
    %v315 = vld [vmem:[#allocation2 + $0xc8] sm:$0xff]
    %v316 = vld [vmem:[#allocation2 + $0xd0] sm:$0xff]
    %v317 = vld [vmem:[#allocation2 + $0xd8] sm:$0xff]
    %v318 = vld [vmem:[#allocation2 + $0xe0] sm:$0xff]
    %v319 = vld [vmem:[#allocation2 + $0xe8] sm:$0xff]
    %v320 = vld [vmem:[#allocation2 + $0xf0] sm:$0xff]
    %v321 = vld [vmem:[#allocation2 + $0xf8] sm:$0xff]
    %v322 = vld [vmem:[#allocation2 + $0x100] sm:$0xff]
    %v323 = vld [vmem:[#allocation2 + $0x108] sm:$0xff]
    %v324 = vld [vmem:[#allocation2 + $0x110] sm:$0xff]
    %v325 = vld [vmem:[#allocation2 + $0x118] sm:$0xff]
    %v326 = vld [vmem:[#allocation2 + $0x120] sm:$0xff]
    %v327 = vld [vmem:[#allocation2 + $0x128] sm:$0xff]
    %v328 = vld [vmem:[#allocation2 + $0x130] sm:$0xff]
    %v329 = vld [vmem:[#allocation2 + $0x138] sm:$0xff]
    %v330 = vld [vmem:[#allocation2 + $0x140] sm:$0xff]
    %v331 = vld [vmem:[#allocation2 + $0x148] sm:$0xff]
    %v332 = vld [vmem:[#allocation2 + $0x150] sm:$0xff]
    %v333 = vld [vmem:[#allocation2 + $0x158] sm:$0xff]
    %v334 = vld [vmem:[#allocation2 + $0x160] sm:$0xff]
    %v335 = vld [vmem:[#allocation2 + $0x168] sm:$0xff]
    %v336 = vld [vmem:[#allocation2 + $0x170] sm:$0xff]
    %v337 = vld [vmem:[#allocation2 + $0x178] sm:$0xff]
    %v338 = vld [vmem:[%s7] sm:$0x3]
    %v340 = vperm.slane %v338, 0
    %v341 = vperm.slane %v338, 1
    %v392 = vunpack.c.l.b16 %v290
    %v393 = vunpack.c.h.b16 %v290
    %v394 = vunpack.c.l.b16 %v291
    %v395 = vunpack.c.h.b16 %v291
    %v396 = vunpack.c.l.b16 %v292
    %v397 = vunpack.c.h.b16 %v292
    %v398 = vunpack.c.l.b16 %v293
    %v399 = vunpack.c.h.b16 %v293
    %v400 = vunpack.c.l.b16 %v294
    %v401 = vunpack.c.h.b16 %v294
    %v402 = vunpack.c.l.b16 %v295
    %v403 = vunpack.c.h.b16 %v295
    %v404 = vunpack.c.l.b16 %v296
    %v405 = vunpack.c.h.b16 %v296
    %v406 = vunpack.c.l.b16 %v297
    %v407 = vunpack.c.h.b16 %v297
    %v408 = vunpack.c.l.b16 %v298
    %v409 = vunpack.c.h.b16 %v298
    %v410 = vunpack.c.l.b16 %v299
    %v411 = vunpack.c.h.b16 %v299
    %v412 = vunpack.c.l.b16 %v300
    %v413 = vunpack.c.h.b16 %v300
    %v414 = vunpack.c.l.b16 %v301
    %v415 = vunpack.c.h.b16 %v301
    %v416 = vunpack.c.l.b16 %v302
    %v417 = vunpack.c.h.b16 %v302
    %v418 = vunpack.c.l.b16 %v303
    %v419 = vunpack.c.h.b16 %v303
    %v420 = vunpack.c.l.b16 %v304
    %v421 = vunpack.c.h.b16 %v304
    %v422 = vunpack.c.l.b16 %v305
    %v423 = vunpack.c.h.b16 %v305
    %v424 = vunpack.c.l.b16 %v306
    %v425 = vunpack.c.h.b16 %v306
    %v426 = vunpack.c.l.b16 %v307
    %v427 = vunpack.c.h.b16 %v307
    %v428 = vunpack.c.l.b16 %v308
    %v429 = vunpack.c.h.b16 %v308
    %v430 = vunpack.c.l.b16 %v309
    %v431 = vunpack.c.h.b16 %v309
    %v432 = vunpack.c.l.b16 %v310
    %v433 = vunpack.c.h.b16 %v310
    %v434 = vunpack.c.l.b16 %v311
    %v435 = vunpack.c.h.b16 %v311
    %v436 = vunpack.c.l.b16 %v312
    %v437 = vunpack.c.h.b16 %v312
    %v438 = vunpack.c.l.b16 %v313
    %v439 = vunpack.c.h.b16 %v313
    %v440 = vunpack.c.l.b16 %v314
    %v441 = vunpack.c.h.b16 %v314
    %v442 = vunpack.c.l.b16 %v315
    %v443 = vunpack.c.h.b16 %v315
    %v444 = vunpack.c.l.b16 %v316
    %v445 = vunpack.c.h.b16 %v316
    %v446 = vunpack.c.l.b16 %v317
    %v447 = vunpack.c.h.b16 %v317
    %v448 = vunpack.c.l.b16 %v318
    %v449 = vunpack.c.h.b16 %v318
    %v450 = vunpack.c.l.b16 %v319
    %v451 = vunpack.c.h.b16 %v319
    %v452 = vunpack.c.l.b16 %v320
    %v453 = vunpack.c.h.b16 %v320
    %v454 = vunpack.c.l.b16 %v321
    %v455 = vunpack.c.h.b16 %v321
    %v456 = vunpack.c.l.b16 %v322
    %v457 = vunpack.c.h.b16 %v322
    %v458 = vunpack.c.l.b16 %v323
    %v459 = vunpack.c.h.b16 %v323
    %v460 = vunpack.c.l.b16 %v324
    %v461 = vunpack.c.h.b16 %v324
    %v462 = vunpack.c.l.b16 %v325
    %v463 = vunpack.c.h.b16 %v325
    %v464 = vunpack.c.l.b16 %v326
    %v465 = vunpack.c.h.b16 %v326
    %v466 = vunpack.c.l.b16 %v327
    %v467 = vunpack.c.h.b16 %v327
    %v468 = vunpack.c.l.b16 %v328
    %v469 = vunpack.c.h.b16 %v328
    %v470 = vunpack.c.l.b16 %v329
    %v471 = vunpack.c.h.b16 %v329
    %v472 = vunpack.c.l.b16 %v330
    %v473 = vunpack.c.h.b16 %v330
    %v474 = vunpack.c.l.b16 %v331
    %v475 = vunpack.c.h.b16 %v331
    %v476 = vunpack.c.l.b16 %v332
    %v477 = vunpack.c.h.b16 %v332
    %v478 = vunpack.c.l.b16 %v333
    %v479 = vunpack.c.h.b16 %v333
    %v480 = vunpack.c.l.b16 %v334
    %v481 = vunpack.c.h.b16 %v334
    %v482 = vunpack.c.l.b16 %v335
    %v483 = vunpack.c.h.b16 %v335
    %v484 = vunpack.c.l.b16 %v336
    %v485 = vunpack.c.h.b16 %v336
    %v486 = vunpack.c.l.b16 %v337
    %v487 = vunpack.c.h.b16 %v337
    %v488 = vpack.c.b16 %v394, %v392
    %v489 = vpack.c.b16 %v395, %v393
    %v490 = vpack.c.b16 %v398, %v396
    %v491 = vpack.c.b16 %v399, %v397
    %v492 = vpack.c.b16 %v402, %v400
    %v493 = vpack.c.b16 %v403, %v401
    %v494 = vpack.c.b16 %v406, %v404
    %v495 = vpack.c.b16 %v407, %v405
    %v496 = vpack.c.b16 %v410, %v408
    %v497 = vpack.c.b16 %v411, %v409
    %v498 = vpack.c.b16 %v414, %v412
    %v499 = vpack.c.b16 %v415, %v413
    %v500 = vpack.c.b16 %v418, %v416
    %v501 = vpack.c.b16 %v419, %v417
    %v502 = vpack.c.b16 %v422, %v420
    %v503 = vpack.c.b16 %v423, %v421
    %v504 = vpack.c.b16 %v426, %v424
    %v505 = vpack.c.b16 %v427, %v425
    %v506 = vpack.c.b16 %v430, %v428
    %v507 = vpack.c.b16 %v431, %v429
    %v508 = vpack.c.b16 %v434, %v432
    %v509 = vpack.c.b16 %v435, %v433
    %v510 = vpack.c.b16 %v438, %v436
    %v511 = vpack.c.b16 %v439, %v437
    %v512 = vpack.c.b16 %v442, %v440
    %v513 = vpack.c.b16 %v443, %v441
    %v514 = vpack.c.b16 %v446, %v444
    %v515 = vpack.c.b16 %v447, %v445
    %v516 = vpack.c.b16 %v450, %v448
    %v517 = vpack.c.b16 %v451, %v449
    %v518 = vpack.c.b16 %v454, %v452
    %v519 = vpack.c.b16 %v455, %v453
    %v520 = vpack.c.b16 %v458, %v456
    %v521 = vpack.c.b16 %v459, %v457
    %v522 = vpack.c.b16 %v462, %v460
    %v523 = vpack.c.b16 %v463, %v461
    %v524 = vpack.c.b16 %v466, %v464
    %v525 = vpack.c.b16 %v467, %v465
    %v526 = vpack.c.b16 %v470, %v468
    %v527 = vpack.c.b16 %v471, %v469
    %v528 = vpack.c.b16 %v474, %v472
    %v529 = vpack.c.b16 %v475, %v473
    %v530 = vpack.c.b16 %v478, %v476
    %v531 = vpack.c.b16 %v479, %v477
    %v532 = vpack.c.b16 %v482, %v480
    %v533 = vpack.c.b16 %v483, %v481
    %v534 = vpack.c.b16 %v486, %v484
    %v535 = vpack.c.b16 %v487, %v485
    %584 = vmatpush.bf16.msra.mxu0 %v502
    %585 = vmatpush.bf16.msra.mxu0 %v500
    %586 = vmatpush.bf16.msra.mxu0 %v498
    %587 = vmatpush.bf16.msra.mxu0 %v496
    %588 = vmatpush.bf16.msra.mxu0 %v494
    %589 = vmatpush.bf16.msra.mxu0 %v492
    %590 = vmatpush.bf16.msra.mxu0 %v490
    %591 = vmatpush.bf16.msra.mxu0 %v488
    %592 = vmatmul.bf16.gmra.mxu0 %v287
    %v593 = vpop.f32.mrf.mxu0
    %v594 = vadd.f32 %v340, %v593
    %v595 = vpop.f32.mrf.mxu0
    %596 = vdwg.mxu0
    %597 = vmatpush.bf16.msra.mxu0 %v518
    %598 = vmatpush.bf16.msra.mxu0 %v516
    %599 = vmatpush.bf16.msra.mxu0 %v514
    %600 = vmatpush.bf16.msra.mxu0 %v512
    %601 = vmatpush.bf16.msra.mxu0 %v510
    %602 = vmatpush.bf16.msra.mxu0 %v508
    %603 = vmatpush.bf16.msra.mxu0 %v506
    %604 = vmatpush.bf16.msra.mxu0 %v504
    %605 = vmatmul.bf16.gmra.mxu0 %v288
    %v606 = vpop.f32.mrf.mxu0
    %v607 = vadd.f32 %v594, %v606
    %v608 = vpop.f32.mrf.mxu0
    %609 = vdwg.mxu0
    %610 = vmatpush.bf16.msra.mxu0 %v534
    %611 = vmatpush.bf16.msra.mxu0 %v532
    %612 = vmatpush.bf16.msra.mxu0 %v530
    %613 = vmatpush.bf16.msra.mxu0 %v528
    %614 = vmatpush.bf16.msra.mxu0 %v526
    %615 = vmatpush.bf16.msra.mxu0 %v524
    %616 = vmatpush.bf16.msra.mxu0 %v522
    %617 = vmatpush.bf16.msra.mxu0 %v520
    %618 = vmatmul.bf16.gmra.mxu0 %v289
    %v619 = vpop.f32.mrf.mxu0
    %v620 = vadd.f32 %v607, %v619
    %v621 = vpop.f32.mrf.mxu0
    %622 = vdwg.mxu0
    %623 = vmatpush.bf16.msra.mxu0 %v503
    %624 = vmatpush.bf16.msra.mxu0 %v501
    %625 = vmatpush.bf16.msra.mxu0 %v499
    %626 = vmatpush.bf16.msra.mxu0 %v497
    %627 = vmatpush.bf16.msra.mxu0 %v495
    %628 = vmatpush.bf16.msra.mxu0 %v493
    %629 = vmatpush.bf16.msra.mxu0 %v491
    %630 = vmatpush.bf16.msra.mxu0 %v489
    %631 = vmatmul.bf16.gmra.mxu0 %v287
    %v632 = vpop.f32.mrf.mxu0
    %v633 = vadd.f32 %v341, %v632
    %v634 = vpop.f32.mrf.mxu0
    %635 = vdwg.mxu0
    %636 = vmatpush.bf16.msra.mxu0 %v519
    %637 = vmatpush.bf16.msra.mxu0 %v517
    %638 = vmatpush.bf16.msra.mxu0 %v515
    %639 = vmatpush.bf16.msra.mxu0 %v513
    %640 = vmatpush.bf16.msra.mxu0 %v511
    %641 = vmatpush.bf16.msra.mxu0 %v509
    %642 = vmatpush.bf16.msra.mxu0 %v507
    %643 = vmatpush.bf16.msra.mxu0 %v505
    %644 = vmatmul.bf16.gmra.mxu0 %v288
    %v645 = vpop.f32.mrf.mxu0
    %v646 = vadd.f32 %v633, %v645
    %v647 = vpop.f32.mrf.mxu0
    %648 = vdwg.mxu0
    %649 = vmatpush.bf16.msra.mxu0 %v535
    %650 = vmatpush.bf16.msra.mxu0 %v533
    %651 = vmatpush.bf16.msra.mxu0 %v531
    %652 = vmatpush.bf16.msra.mxu0 %v529
    %653 = vmatpush.bf16.msra.mxu0 %v527
    %654 = vmatpush.bf16.msra.mxu0 %v525
    %655 = vmatpush.bf16.msra.mxu0 %v523
    %656 = vmatpush.bf16.msra.mxu0 %v521
    %657 = vmatmul.bf16.gmra.mxu0 %v289
    %v658 = vpop.f32.mrf.mxu0
    %v659 = vadd.f32 %v646, %v658
    %v660 = vpop.f32.mrf.mxu0
    %661 = vdwg.mxu0
    %v662 = vmax.f32 %v620, 0.0
    %v663 = vmax.f32 %v659, 0.0
    %v664 = vpack.c.bf16 %v662, %v662
    %v665 = vpack.c.bf16 %v663, %v663
    %v666 = vld [vmem:[#allocation4] sm:$0xff]
    %v667 = vld [vmem:[#allocation4 + $0x8] sm:$0xff]
    %v668 = vld [vmem:[#allocation4 + $0x10] sm:$0xff]
    %v669 = vld [vmem:[#allocation4 + $0x18] sm:$0xff]
    %v670 = vld [vmem:[#allocation4 + $0x20] sm:$0xff]
    %v671 = vld [vmem:[#allocation4 + $0x28] sm:$0xff]
    %v672 = vld [vmem:[#allocation4 + $0x30] sm:$0xff]
    %v673 = vld [vmem:[#allocation4 + $0x38] sm:$0xff]
    %v674 = vld [vmem:[#allocation4 + $0x40] sm:$0xff]
    %v675 = vld [vmem:[#allocation4 + $0x48] sm:$0xff]
    %v676 = vld [vmem:[#allocation4 + $0x50] sm:$0xff]
    %v677 = vld [vmem:[#allocation4 + $0x58] sm:$0xff]
    %v678 = vld [vmem:[#allocation4 + $0x60] sm:$0xff]
    %v679 = vld [vmem:[#allocation4 + $0x68] sm:$0xff]
    %v680 = vld [vmem:[#allocation4 + $0x70] sm:$0xff]
    %v681 = vld [vmem:[#allocation4 + $0x78] sm:$0xff]
    %v682 = vld [vmem:[#allocation4 + $0x80] sm:$0xff]
    %v683 = vld [vmem:[#allocation4 + $0x88] sm:$0xff]
    %v684 = vld [vmem:[#allocation4 + $0x90] sm:$0xff]
    %v685 = vld [vmem:[#allocation4 + $0x98] sm:$0xff]
    %v686 = vld [vmem:[#allocation4 + $0xa0] sm:$0xff]
    %v687 = vld [vmem:[#allocation4 + $0xa8] sm:$0xff]
    %v688 = vld [vmem:[#allocation4 + $0xb0] sm:$0xff]
    %v689 = vld [vmem:[#allocation4 + $0xb8] sm:$0xff]
    %v690 = vld [vmem:[#allocation4 + $0xc0] sm:$0xff]
    %v691 = vld [vmem:[#allocation4 + $0xc8] sm:$0xff]
    %v692 = vld [vmem:[#allocation4 + $0xd0] sm:$0xff]
    %v693 = vld [vmem:[#allocation4 + $0xd8] sm:$0xff]
    %v694 = vld [vmem:[#allocation4 + $0xe0] sm:$0xff]
    %v695 = vld [vmem:[#allocation4 + $0xe8] sm:$0xff]
    %v696 = vld [vmem:[#allocation4 + $0xf0] sm:$0xff]
    %v697 = vld [vmem:[#allocation4 + $0xf8] sm:$0xff]
    %v698 = vld [vmem:[%s9] sm:$0x3]
    %v700 = vperm.slane %v698, 0
    %v701 = vperm.slane %v698, 1
    %v736 = vunpack.c.l.b16 %v666
    %v737 = vunpack.c.h.b16 %v666
    %v738 = vunpack.c.l.b16 %v667
    %v739 = vunpack.c.h.b16 %v667
    %v740 = vunpack.c.l.b16 %v668
    %v741 = vunpack.c.h.b16 %v668
    %v742 = vunpack.c.l.b16 %v669
    %v743 = vunpack.c.h.b16 %v669
    %v744 = vunpack.c.l.b16 %v670
    %v745 = vunpack.c.h.b16 %v670
    %v746 = vunpack.c.l.b16 %v671
    %v747 = vunpack.c.h.b16 %v671
    %v748 = vunpack.c.l.b16 %v672
    %v749 = vunpack.c.h.b16 %v672
    %v750 = vunpack.c.l.b16 %v673
    %v751 = vunpack.c.h.b16 %v673
    %v752 = vunpack.c.l.b16 %v674
    %v753 = vunpack.c.h.b16 %v674
    %v754 = vunpack.c.l.b16 %v675
    %v755 = vunpack.c.h.b16 %v675
    %v756 = vunpack.c.l.b16 %v676
    %v757 = vunpack.c.h.b16 %v676
    %v758 = vunpack.c.l.b16 %v677
    %v759 = vunpack.c.h.b16 %v677
    %v760 = vunpack.c.l.b16 %v678
    %v761 = vunpack.c.h.b16 %v678
    %v762 = vunpack.c.l.b16 %v679
    %v763 = vunpack.c.h.b16 %v679
    %v764 = vunpack.c.l.b16 %v680
    %v765 = vunpack.c.h.b16 %v680
    %v766 = vunpack.c.l.b16 %v681
    %v767 = vunpack.c.h.b16 %v681
    %v768 = vunpack.c.l.b16 %v682
    %v769 = vunpack.c.h.b16 %v682
    %v770 = vunpack.c.l.b16 %v683
    %v771 = vunpack.c.h.b16 %v683
    %v772 = vunpack.c.l.b16 %v684
    %v773 = vunpack.c.h.b16 %v684
    %v774 = vunpack.c.l.b16 %v685
    %v775 = vunpack.c.h.b16 %v685
    %v776 = vunpack.c.l.b16 %v686
    %v777 = vunpack.c.h.b16 %v686
    %v778 = vunpack.c.l.b16 %v687
    %v779 = vunpack.c.h.b16 %v687
    %v780 = vunpack.c.l.b16 %v688
    %v781 = vunpack.c.h.b16 %v688
    %v782 = vunpack.c.l.b16 %v689
    %v783 = vunpack.c.h.b16 %v689
    %v784 = vunpack.c.l.b16 %v690
    %v785 = vunpack.c.h.b16 %v690
    %v786 = vunpack.c.l.b16 %v691
    %v787 = vunpack.c.h.b16 %v691
    %v788 = vunpack.c.l.b16 %v692
    %v789 = vunpack.c.h.b16 %v692
    %v790 = vunpack.c.l.b16 %v693
    %v791 = vunpack.c.h.b16 %v693
    %v792 = vunpack.c.l.b16 %v694
    %v793 = vunpack.c.h.b16 %v694
    %v794 = vunpack.c.l.b16 %v695
    %v795 = vunpack.c.h.b16 %v695
    %v796 = vunpack.c.l.b16 %v696
    %v797 = vunpack.c.h.b16 %v696
    %v798 = vunpack.c.l.b16 %v697
    %v799 = vunpack.c.h.b16 %v697
    %v800 = vpack.c.b16 %v738, %v736
    %v801 = vpack.c.b16 %v739, %v737
    %v802 = vpack.c.b16 %v742, %v740
    %v803 = vpack.c.b16 %v743, %v741
    %v804 = vpack.c.b16 %v746, %v744
    %v805 = vpack.c.b16 %v747, %v745
    %v806 = vpack.c.b16 %v750, %v748
    %v807 = vpack.c.b16 %v751, %v749
    %v808 = vpack.c.b16 %v754, %v752
    %v809 = vpack.c.b16 %v755, %v753
    %v810 = vpack.c.b16 %v758, %v756
    %v811 = vpack.c.b16 %v759, %v757
    %v812 = vpack.c.b16 %v762, %v760
    %v813 = vpack.c.b16 %v763, %v761
    %v814 = vpack.c.b16 %v766, %v764
    %v815 = vpack.c.b16 %v767, %v765
    %v816 = vpack.c.b16 %v770, %v768
    %v817 = vpack.c.b16 %v771, %v769
    %v818 = vpack.c.b16 %v774, %v772
    %v819 = vpack.c.b16 %v775, %v773
    %v820 = vpack.c.b16 %v778, %v776
    %v821 = vpack.c.b16 %v779, %v777
    %v822 = vpack.c.b16 %v782, %v780
    %v823 = vpack.c.b16 %v783, %v781
    %v824 = vpack.c.b16 %v786, %v784
    %v825 = vpack.c.b16 %v787, %v785
    %v826 = vpack.c.b16 %v790, %v788
    %v827 = vpack.c.b16 %v791, %v789
    %v828 = vpack.c.b16 %v794, %v792
    %v829 = vpack.c.b16 %v795, %v793
    %v830 = vpack.c.b16 %v798, %v796
    %v831 = vpack.c.b16 %v799, %v797
    %864 = vmatpush.bf16.msra.mxu0 %v814
    %865 = vmatpush.bf16.msra.mxu0 %v812
    %866 = vmatpush.bf16.msra.mxu0 %v810
    %867 = vmatpush.bf16.msra.mxu0 %v808
    %868 = vmatpush.bf16.msra.mxu0 %v806
    %869 = vmatpush.bf16.msra.mxu0 %v804
    %870 = vmatpush.bf16.msra.mxu0 %v802
    %871 = vmatpush.bf16.msra.mxu0 %v800
    %872 = vmatmul.bf16.gmra.mxu0 %v664
    %v873 = vpop.f32.mrf.mxu0
    %v874 = vadd.f32 %v700, %v873
    %v875 = vpop.f32.mrf.mxu0
    %876 = vdwg.mxu0
    %877 = vmatpush.bf16.msra.mxu0 %v830
    %878 = vmatpush.bf16.msra.mxu0 %v828
    %879 = vmatpush.bf16.msra.mxu0 %v826
    %880 = vmatpush.bf16.msra.mxu0 %v824
    %881 = vmatpush.bf16.msra.mxu0 %v822
    %882 = vmatpush.bf16.msra.mxu0 %v820
    %883 = vmatpush.bf16.msra.mxu0 %v818
    %884 = vmatpush.bf16.msra.mxu0 %v816
    %885 = vmatmul.bf16.gmra.mxu0 %v665
    %v886 = vpop.f32.mrf.mxu0
    %v887 = vadd.f32 %v874, %v886
    %v888 = vpop.f32.mrf.mxu0
    %889 = vdwg.mxu0
    %890 = vmatpush.bf16.msra.mxu0 %v815
    %891 = vmatpush.bf16.msra.mxu0 %v813
    %892 = vmatpush.bf16.msra.mxu0 %v811
    %893 = vmatpush.bf16.msra.mxu0 %v809
    %894 = vmatpush.bf16.msra.mxu0 %v807
    %895 = vmatpush.bf16.msra.mxu0 %v805
    %896 = vmatpush.bf16.msra.mxu0 %v803
    %897 = vmatpush.bf16.msra.mxu0 %v801
    %898 = vmatmul.bf16.gmra.mxu0 %v664
    %v899 = vpop.f32.mrf.mxu0
    %v900 = vadd.f32 %v701, %v899
    %v901 = vpop.f32.mrf.mxu0
    %902 = vdwg.mxu0
    %903 = vmatpush.bf16.msra.mxu0 %v831
    %904 = vmatpush.bf16.msra.mxu0 %v829
    %905 = vmatpush.bf16.msra.mxu0 %v827
    %906 = vmatpush.bf16.msra.mxu0 %v825
    %907 = vmatpush.bf16.msra.mxu0 %v823
    %908 = vmatpush.bf16.msra.mxu0 %v821
    %909 = vmatpush.bf16.msra.mxu0 %v819
    %910 = vmatpush.bf16.msra.mxu0 %v817
    %911 = vmatmul.bf16.gmra.mxu0 %v665
    %v912 = vpop.f32.mrf.mxu0
    %v913 = vadd.f32 %v900, %v912
    %v914 = vpop.f32.mrf.mxu0
    %915 = vdwg.mxu0
    %v916 = vmax.f32 %v887, 0.0
    %v917 = vmax.f32 %v913, 0.0
    %v918 = vpack.c.bf16 %v916, %v916
    %v919 = vpack.c.bf16 %v917, %v917
    %v920 = vld [vmem:[#allocation6] sm:$0xff]
    %v921 = vld [vmem:[#allocation6 + $0x8] sm:$0xff]
    %v922 = vld [vmem:[#allocation6 + $0x10] sm:$0xff]
    %v923 = vld [vmem:[#allocation6 + $0x18] sm:$0xff]
    %v924 = vld [vmem:[#allocation6 + $0x20] sm:$0xff]
    %v925 = vld [vmem:[#allocation6 + $0x28] sm:$0xff]
    %v926 = vld [vmem:[#allocation6 + $0x30] sm:$0xff]
    %v927 = vld [vmem:[#allocation6 + $0x38] sm:$0xff]
    %v928 = vld [vmem:[#allocation6 + $0x40] sm:$0xff]
    %v929 = vld [vmem:[#allocation6 + $0x48] sm:$0xff]
    %v930 = vld [vmem:[#allocation6 + $0x50] sm:$0xff]
    %v931 = vld [vmem:[#allocation6 + $0x58] sm:$0xff]
    %v932 = vld [vmem:[#allocation6 + $0x60] sm:$0xff]
    %v933 = vld [vmem:[#allocation6 + $0x68] sm:$0xff]
    %v934 = vld [vmem:[#allocation6 + $0x70] sm:$0xff]
    %v935 = vld [vmem:[#allocation6 + $0x78] sm:$0xff]
    %v936 = vld [vmem:[#allocation6 + $0x80] sm:$0xff]
    %v937 = vld [vmem:[#allocation6 + $0x88] sm:$0xff]
    %v938 = vld [vmem:[#allocation6 + $0x90] sm:$0xff]
    %v939 = vld [vmem:[#allocation6 + $0x98] sm:$0xff]
    %v940 = vld [vmem:[#allocation6 + $0xa0] sm:$0xff]
    %v941 = vld [vmem:[#allocation6 + $0xa8] sm:$0xff]
    %v942 = vld [vmem:[#allocation6 + $0xb0] sm:$0xff]
    %v943 = vld [vmem:[#allocation6 + $0xb8] sm:$0xff]
    %v944 = vld [vmem:[#allocation6 + $0xc0] sm:$0xff]
    %v945 = vld [vmem:[#allocation6 + $0xc8] sm:$0xff]
    %v946 = vld [vmem:[#allocation6 + $0xd0] sm:$0xff]
    %v947 = vld [vmem:[#allocation6 + $0xd8] sm:$0xff]
    %v948 = vld [vmem:[#allocation6 + $0xe0] sm:$0xff]
    %v949 = vld [vmem:[#allocation6 + $0xe8] sm:$0xff]
    %v950 = vld [vmem:[#allocation6 + $0xf0] sm:$0xff]
    %v951 = vld [vmem:[#allocation6 + $0xf8] sm:$0xff]
    %v952 = vld [vmem:[%s11] sm:$0x3]
    %v954 = vperm.slane %v952, 0
    %v955 = vperm.slane %v952, 1
    %v990 = vunpack.c.l.b16 %v920
    %v991 = vunpack.c.h.b16 %v920
    %v992 = vunpack.c.l.b16 %v921
    %v993 = vunpack.c.h.b16 %v921
    %v994 = vunpack.c.l.b16 %v922
    %v995 = vunpack.c.h.b16 %v922
    %v996 = vunpack.c.l.b16 %v923
    %v997 = vunpack.c.h.b16 %v923
    %v998 = vunpack.c.l.b16 %v924
    %v999 = vunpack.c.h.b16 %v924
    %v1000 = vunpack.c.l.b16 %v925
    %v1001 = vunpack.c.h.b16 %v925
    %v1002 = vunpack.c.l.b16 %v926
    %v1003 = vunpack.c.h.b16 %v926
    %v1004 = vunpack.c.l.b16 %v927
    %v1005 = vunpack.c.h.b16 %v927
    %v1006 = vunpack.c.l.b16 %v928
    %v1007 = vunpack.c.h.b16 %v928
    %v1008 = vunpack.c.l.b16 %v929
    %v1009 = vunpack.c.h.b16 %v929
    %v1010 = vunpack.c.l.b16 %v930
    %v1011 = vunpack.c.h.b16 %v930
    %v1012 = vunpack.c.l.b16 %v931
    %v1013 = vunpack.c.h.b16 %v931
    %v1014 = vunpack.c.l.b16 %v932
    %v1015 = vunpack.c.h.b16 %v932
    %v1016 = vunpack.c.l.b16 %v933
    %v1017 = vunpack.c.h.b16 %v933
    %v1018 = vunpack.c.l.b16 %v934
    %v1019 = vunpack.c.h.b16 %v934
    %v1020 = vunpack.c.l.b16 %v935
    %v1021 = vunpack.c.h.b16 %v935
    %v1022 = vunpack.c.l.b16 %v936
    %v1023 = vunpack.c.h.b16 %v936
    %v1024 = vunpack.c.l.b16 %v937
    %v1025 = vunpack.c.h.b16 %v937
    %v1026 = vunpack.c.l.b16 %v938
    %v1027 = vunpack.c.h.b16 %v938
    %v1028 = vunpack.c.l.b16 %v939
    %v1029 = vunpack.c.h.b16 %v939
    %v1030 = vunpack.c.l.b16 %v940
    %v1031 = vunpack.c.h.b16 %v940
    %v1032 = vunpack.c.l.b16 %v941
    %v1033 = vunpack.c.h.b16 %v941
    %v1034 = vunpack.c.l.b16 %v942
    %v1035 = vunpack.c.h.b16 %v942
    %v1036 = vunpack.c.l.b16 %v943
    %v1037 = vunpack.c.h.b16 %v943
    %v1038 = vunpack.c.l.b16 %v944
    %v1039 = vunpack.c.h.b16 %v944
    %v1040 = vunpack.c.l.b16 %v945
    %v1041 = vunpack.c.h.b16 %v945
    %v1042 = vunpack.c.l.b16 %v946
    %v1043 = vunpack.c.h.b16 %v946
    %v1044 = vunpack.c.l.b16 %v947
    %v1045 = vunpack.c.h.b16 %v947
    %v1046 = vunpack.c.l.b16 %v948
    %v1047 = vunpack.c.h.b16 %v948
    %v1048 = vunpack.c.l.b16 %v949
    %v1049 = vunpack.c.h.b16 %v949
    %v1050 = vunpack.c.l.b16 %v950
    %v1051 = vunpack.c.h.b16 %v950
    %v1052 = vunpack.c.l.b16 %v951
    %v1053 = vunpack.c.h.b16 %v951
    %v1054 = vpack.c.b16 %v992, %v990
    %v1055 = vpack.c.b16 %v993, %v991
    %v1056 = vpack.c.b16 %v996, %v994
    %v1057 = vpack.c.b16 %v997, %v995
    %v1058 = vpack.c.b16 %v1000, %v998
    %v1059 = vpack.c.b16 %v1001, %v999
    %v1060 = vpack.c.b16 %v1004, %v1002
    %v1061 = vpack.c.b16 %v1005, %v1003
    %v1062 = vpack.c.b16 %v1008, %v1006
    %v1063 = vpack.c.b16 %v1009, %v1007
    %v1064 = vpack.c.b16 %v1012, %v1010
    %v1065 = vpack.c.b16 %v1013, %v1011
    %v1066 = vpack.c.b16 %v1016, %v1014
    %v1067 = vpack.c.b16 %v1017, %v1015
    %v1068 = vpack.c.b16 %v1020, %v1018
    %v1069 = vpack.c.b16 %v1021, %v1019
    %v1070 = vpack.c.b16 %v1024, %v1022
    %v1071 = vpack.c.b16 %v1025, %v1023
    %v1072 = vpack.c.b16 %v1028, %v1026
    %v1073 = vpack.c.b16 %v1029, %v1027
    %v1074 = vpack.c.b16 %v1032, %v1030
    %v1075 = vpack.c.b16 %v1033, %v1031
    %v1076 = vpack.c.b16 %v1036, %v1034
    %v1077 = vpack.c.b16 %v1037, %v1035
    %v1078 = vpack.c.b16 %v1040, %v1038
    %v1079 = vpack.c.b16 %v1041, %v1039
    %v1080 = vpack.c.b16 %v1044, %v1042
    %v1081 = vpack.c.b16 %v1045, %v1043
    %v1082 = vpack.c.b16 %v1048, %v1046
    %v1083 = vpack.c.b16 %v1049, %v1047
    %v1084 = vpack.c.b16 %v1052, %v1050
    %v1085 = vpack.c.b16 %v1053, %v1051
    %1118 = vmatpush.bf16.msra.mxu0 %v1068
    %1119 = vmatpush.bf16.msra.mxu0 %v1066
    %1120 = vmatpush.bf16.msra.mxu0 %v1064
    %1121 = vmatpush.bf16.msra.mxu0 %v1062
    %1122 = vmatpush.bf16.msra.mxu0 %v1060
    %1123 = vmatpush.bf16.msra.mxu0 %v1058
    %1124 = vmatpush.bf16.msra.mxu0 %v1056
    %1125 = vmatpush.bf16.msra.mxu0 %v1054
    %1126 = vmatmul.bf16.gmra.mxu0 %v918
    %v1127 = vpop.f32.mrf.mxu0
    %v1128 = vadd.f32 %v954, %v1127
    %v1129 = vpop.f32.mrf.mxu0
    %1130 = vdwg.mxu0
    %1131 = vmatpush.bf16.msra.mxu0 %v1084
    %1132 = vmatpush.bf16.msra.mxu0 %v1082
    %1133 = vmatpush.bf16.msra.mxu0 %v1080
    %1134 = vmatpush.bf16.msra.mxu0 %v1078
    %1135 = vmatpush.bf16.msra.mxu0 %v1076
    %1136 = vmatpush.bf16.msra.mxu0 %v1074
    %1137 = vmatpush.bf16.msra.mxu0 %v1072
    %1138 = vmatpush.bf16.msra.mxu0 %v1070
    %1139 = vmatmul.bf16.gmra.mxu0 %v919
    %v1140 = vpop.f32.mrf.mxu0
    %v1141 = vadd.f32 %v1128, %v1140
    %v1142 = vpop.f32.mrf.mxu0
    %1143 = vdwg.mxu0
    %1144 = vmatpush.bf16.msra.mxu0 %v1069
    %1145 = vmatpush.bf16.msra.mxu0 %v1067
    %1146 = vmatpush.bf16.msra.mxu0 %v1065
    %1147 = vmatpush.bf16.msra.mxu0 %v1063
    %1148 = vmatpush.bf16.msra.mxu0 %v1061
    %1149 = vmatpush.bf16.msra.mxu0 %v1059
    %1150 = vmatpush.bf16.msra.mxu0 %v1057
    %1151 = vmatpush.bf16.msra.mxu0 %v1055
    %1152 = vmatmul.bf16.gmra.mxu0 %v918
    %v1153 = vpop.f32.mrf.mxu0
    %v1154 = vadd.f32 %v955, %v1153
    %v1155 = vpop.f32.mrf.mxu0
    %1156 = vdwg.mxu0
    %1157 = vmatpush.bf16.msra.mxu0 %v1085
    %1158 = vmatpush.bf16.msra.mxu0 %v1083
    %1159 = vmatpush.bf16.msra.mxu0 %v1081
    %1160 = vmatpush.bf16.msra.mxu0 %v1079
    %1161 = vmatpush.bf16.msra.mxu0 %v1077
    %1162 = vmatpush.bf16.msra.mxu0 %v1075
    %1163 = vmatpush.bf16.msra.mxu0 %v1073
    %1164 = vmatpush.bf16.msra.mxu0 %v1071
    %1165 = vmatmul.bf16.gmra.mxu0 %v919
    %v1166 = vpop.f32.mrf.mxu0
    %v1167 = vadd.f32 %v1154, %v1166
    %v1168 = vpop.f32.mrf.mxu0
    %1169 = vdwg.mxu0
    %v1170 = vmax.f32 %v1141, 0.0
    %v1171 = vmax.f32 %v1167, 0.0
    %v1172 = vpack.c.bf16 %v1170, %v1170
    %v1173 = vpack.c.bf16 %v1171, %v1171
    %v1174 = vld [vmem:[#allocation7] sm:$0xf]
    %v1175 = vld [vmem:[#allocation7 + $0x4] sm:$0xf]
    %v1176 = vld [vmem:[#allocation7 + $0x8] sm:$0xf]
    %v1177 = vld [vmem:[#allocation7 + $0xc] sm:$0xf]
    %v1178 = vld [vmem:[#allocation7 + $0x10] sm:$0xf]
    %v1179 = vld [vmem:[#allocation7 + $0x14] sm:$0xf]
    %v1180 = vld [vmem:[#allocation7 + $0x18] sm:$0xf]
    %v1181 = vld [vmem:[#allocation7 + $0x1c] sm:$0xf]
    %v1182 = vld [vmem:[#allocation7 + $0x20] sm:$0xf]
    %v1183 = vld [vmem:[#allocation7 + $0x24] sm:$0xf]
    %v1184 = vld [vmem:[#allocation7 + $0x28] sm:$0xf]
    %v1185 = vld [vmem:[#allocation7 + $0x2c] sm:$0xf]
    %v1186 = vld [vmem:[#allocation7 + $0x30] sm:$0xf]
    %v1187 = vld [vmem:[#allocation7 + $0x34] sm:$0xf]
    %v1188 = vld [vmem:[#allocation7 + $0x38] sm:$0xf]
    %v1189 = vld [vmem:[#allocation7 + $0x3c] sm:$0xf]
    %v1190 = vld [vmem:[#allocation7 + $0x40] sm:$0xf]
    %v1191 = vld [vmem:[#allocation7 + $0x44] sm:$0xf]
    %v1192 = vld [vmem:[#allocation7 + $0x48] sm:$0xf]
    %v1193 = vld [vmem:[#allocation7 + $0x4c] sm:$0xf]
    %v1194 = vld [vmem:[#allocation7 + $0x50] sm:$0xf]
    %v1195 = vld [vmem:[#allocation7 + $0x54] sm:$0xf]
    %v1196 = vld [vmem:[#allocation7 + $0x58] sm:$0xf]
    %v1197 = vld [vmem:[#allocation7 + $0x5c] sm:$0xf]
    %v1198 = vld [vmem:[#allocation7 + $0x60] sm:$0xf]
    %v1199 = vld [vmem:[#allocation7 + $0x64] sm:$0xf]
    %v1200 = vld [vmem:[#allocation7 + $0x68] sm:$0xf]
    %v1201 = vld [vmem:[#allocation7 + $0x6c] sm:$0xf]
    %v1202 = vld [vmem:[#allocation7 + $0x70] sm:$0xf]
    %v1203 = vld [vmem:[#allocation7 + $0x74] sm:$0xf]
    %v1204 = vld [vmem:[#allocation7 + $0x78] sm:$0xf]
    %v1205 = vld [vmem:[#allocation7 + $0x7c] sm:$0xf]
    %v1206 = vld [vmem:[%s13] sm:$0x1]
    %v1208 = vperm.slane %v1206, 0
    %v1242 = vunpack.c.l.b16 %v1174
    %v1243 = vunpack.c.l.b16 %v1175
    %v1244 = vunpack.c.l.b16 %v1176
    %v1245 = vunpack.c.l.b16 %v1177
    %v1246 = vunpack.c.l.b16 %v1178
    %v1247 = vunpack.c.l.b16 %v1179
    %v1248 = vunpack.c.l.b16 %v1180
    %v1249 = vunpack.c.l.b16 %v1181
    %v1250 = vunpack.c.l.b16 %v1182
    %v1251 = vunpack.c.l.b16 %v1183
    %v1252 = vunpack.c.l.b16 %v1184
    %v1253 = vunpack.c.l.b16 %v1185
    %v1254 = vunpack.c.l.b16 %v1186
    %v1255 = vunpack.c.l.b16 %v1187
    %v1256 = vunpack.c.l.b16 %v1188
    %v1257 = vunpack.c.l.b16 %v1189
    %v1258 = vunpack.c.l.b16 %v1190
    %v1259 = vunpack.c.l.b16 %v1191
    %v1260 = vunpack.c.l.b16 %v1192
    %v1261 = vunpack.c.l.b16 %v1193
    %v1262 = vunpack.c.l.b16 %v1194
    %v1263 = vunpack.c.l.b16 %v1195
    %v1264 = vunpack.c.l.b16 %v1196
    %v1265 = vunpack.c.l.b16 %v1197
    %v1266 = vunpack.c.l.b16 %v1198
    %v1267 = vunpack.c.l.b16 %v1199
    %v1268 = vunpack.c.l.b16 %v1200
    %v1269 = vunpack.c.l.b16 %v1201
    %v1270 = vunpack.c.l.b16 %v1202
    %v1271 = vunpack.c.l.b16 %v1203
    %v1272 = vunpack.c.l.b16 %v1204
    %v1273 = vunpack.c.l.b16 %v1205
    %v1274 = vpack.c.b16 %v1243, %v1242
    %v1275 = vpack.c.b16 %v1245, %v1244
    %v1276 = vpack.c.b16 %v1247, %v1246
    %v1277 = vpack.c.b16 %v1249, %v1248
    %v1278 = vpack.c.b16 %v1251, %v1250
    %v1279 = vpack.c.b16 %v1253, %v1252
    %v1280 = vpack.c.b16 %v1255, %v1254
    %v1281 = vpack.c.b16 %v1257, %v1256
    %v1282 = vpack.c.b16 %v1259, %v1258
    %v1283 = vpack.c.b16 %v1261, %v1260
    %v1284 = vpack.c.b16 %v1263, %v1262
    %v1285 = vpack.c.b16 %v1265, %v1264
    %v1286 = vpack.c.b16 %v1267, %v1266
    %v1287 = vpack.c.b16 %v1269, %v1268
    %v1288 = vpack.c.b16 %v1271, %v1270
    %v1289 = vpack.c.b16 %v1273, %v1272
    %1306 = vmatpush.bf16.msra.mxu0 %v1281
    %1307 = vmatpush.bf16.msra.mxu0 %v1280
    %1308 = vmatpush.bf16.msra.mxu0 %v1279
    %1309 = vmatpush.bf16.msra.mxu0 %v1278
    %1310 = vmatpush.bf16.msra.mxu0 %v1277
    %1311 = vmatpush.bf16.msra.mxu0 %v1276
    %1312 = vmatpush.bf16.msra.mxu0 %v1275
    %1313 = vmatpush.bf16.msra.mxu0 %v1274
    %1314 = vmatmul.bf16.gmra.mxu0 %v1172
    %v1315 = vpop.f32.mrf.mxu0
    %v1316 = vadd.f32 %v1208, %v1315
    %v1317 = vpop.f32.mrf.mxu0
    %1318 = vdwg.mxu0
    %1319 = vmatpush.bf16.msra.mxu0 %v1289
    %1320 = vmatpush.bf16.msra.mxu0 %v1288
    %1321 = vmatpush.bf16.msra.mxu0 %v1287
    %1322 = vmatpush.bf16.msra.mxu0 %v1286
    %1323 = vmatpush.bf16.msra.mxu0 %v1285
    %1324 = vmatpush.bf16.msra.mxu0 %v1284
    %1325 = vmatpush.bf16.msra.mxu0 %v1283
    %1326 = vmatpush.bf16.msra.mxu0 %v1282
    %1327 = vmatmul.bf16.gmra.mxu0 %v1173
    %v1328 = vpop.f32.mrf.mxu0
    %v1329 = vadd.f32 %v1316, %v1328
    %v1330 = vpop.f32.mrf.mxu0
    %1331 = vdwg.mxu0
    %1332 = vst [vmem:[%s14] sm:$0x3] %v1329
    // Predicated region
    $region74: #{cnn_policy_forward.1} parent=1 // pred_check
      _
    $region75: #{cnn_policy_forward.1} parent=1 // pred_check_branch
      %1334 = sbr.rel (0) target = $region77
    $region76: #{cnn_policy_forward.1} parent=1 // pred_region
      _
    $region77: #{cnn_policy_forward.1} parent=1 // pred_fallthru
      _
    // Predicated region
    $region78: #{cnn_policy_forward.1} parent=1 // pred_check
      _
    $region79: #{cnn_policy_forward.1} parent=1 // pred_check_branch
      %1336 = sbr.rel (0) target = $region81
    $region80: #{cnn_policy_forward.1} parent=1 // pred_region
      _
    $region81: #{cnn_policy_forward.1} parent=1 // pred_fallthru
      _
    %1337 = vsyncpa [#allocation3], 1
    %1338 = vsyncpa [#allocation5], 1
    %1339 = vsyncpa [#allocation8], 1

</llo_original>
